<compile_context>
chip_gen: v5e
topology: v5e:2x2
jax: 0.10.0
libtpu: 0.0.40
codegen_flags: <defaults>
</compile_context>

<pallas_src>
import functools

import jax
import jax.numpy as jnp
from jax import lax
from jax.experimental import pallas as pl
from jax.experimental.pallas import tpu as pltpu


def _vmem_limit_bytes(per_step_block_bytes):
    """Scoped-VMEM budget: ~double-buffered blocks + headroom, capped well
    under v7x's 64 MiB physical VMEM, never below the 16 MiB v5e default."""
    return int(min(48 * 1024 * 1024,
                   max(16 * 1024 * 1024, 4 * int(per_step_block_bytes))))


# --------------------------------------------------------------------------
# Host-side layout helpers (pure metadata / tiny copies — no 9x patch blowup)
# --------------------------------------------------------------------------
def space_to_depth_conv_input(im_nchw):
    """NCHW image -> zero-padded, space-to-depth, flattened conv input.

    Returns x_flat (B, Hs*Ws + Ws, 4*Cin) f32 (one extra zero s2d row appended
    so the in-kernel shifted slices stay in bounds) plus (Ho, Wo, Ws).
    """
    B, Cin, H, W = im_nchw.shape
    x = jnp.transpose(im_nchw, (0, 2, 3, 1))                 # NHWC
    Hp = H + 2 + ((H + 2) % 2)                               # SAME pad, even
    Wp = W + 2 + ((W + 2) % 2)
    xp = jnp.pad(x, ((0, 0), (1, Hp - H - 1), (1, Wp - W - 1), (0, 0)))
    Hs, Ws = Hp // 2, Wp // 2
    Ho, Wo = Hs - 1, Ws - 1
    xs = xp.reshape(B, Hs, 2, Ws, 2, Cin)
    xs = xs.transpose(0, 1, 3, 2, 4, 5).reshape(B, Hs * Ws, 4 * Cin)
    xs = jnp.pad(xs, ((0, 0), (0, Ws), (0, 0)))              # 1 extra zero row
    return xs, Ho, Wo, Ws


def pack_conv3x3_stride2_weights(w_conv):
    """(3,3,Cin,Cout) conv weight -> (4, 4*Cin, Cout) shifted-matmul weights
    matching the space-to-depth input packing (zero taps where dy/dx == 3)."""
    _, _, cin, cout = w_conv.shape
    w2 = jnp.zeros((2, 2, 4 * cin, cout), w_conv.dtype)
    for dp in range(2):
        for dq in range(2):
            for a in range(2):
                for b in range(2):
                    dy, dx = 2 * dp + a, 2 * dq + b
                    if dy < 3 and dx < 3:
                        sub = a * 2 + b
                        w2 = w2.at[dp, dq, sub * cin:(sub + 1) * cin, :].set(
                            w_conv[dy, dx])
    return w2.reshape(4, 4 * cin, cout)


# --------------------------------------------------------------------------
# Fused backbone kernel: 3x3/stride-2 conv (+bias+ReLU) + 1x1 head conv.
# One grid step per image; features written as bf16.
# --------------------------------------------------------------------------
def _backbone_head_feat_kernel(x_ref, w2_ref, b1_ref, wh_ref, bh_ref, out_ref,
                               *, Ho, Wo, Ws):
    # x_ref : (1, Lpad, 4*Cin) f32  flattened space-to-depth image
    # w2_ref: (4, 4*Cin, Cb) f32    packed conv weights
    # wh_ref: (Cb, Ch) bf16         1x1 head conv
    # out_ref:(1, Ho, Wo, Ch) bf16
    L = Ho * Ws                      # rows computed (one garbage col per row)
    cb = w2_ref.shape[2]
    acc = jnp.zeros((L, cb), jnp.float32)
    offsets = (0, 1, Ws, Ws + 1)     # (dp, dq) = (0,0),(0,1),(1,0),(1,1)
    for k in range(4):
        xs = x_ref[0, pl.ds(offsets[k], L), :]               # (L, 4*Cin)
        acc = acc + jnp.dot(xs, w2_ref[k],
                            preferred_element_type=jnp.float32)
    h = jnp.maximum(acc + b1_ref[...], 0.0)                  # conv+bias+ReLU
    feat = jnp.dot(h.astype(jnp.bfloat16), wh_ref[...],
                   preferred_element_type=jnp.float32) + bh_ref[...]
    # Drop the one garbage column per output row (flat stride Ws -> Wo cols).
    # TODO(synk): for large Ho, switch the static unroll to a fori_loop + VMEM
    # scratch and tile the image spatially across an extra grid axis.
    for i in range(Ho):
        out_ref[0, i] = feat[i * Ws:i * Ws + Wo, :].astype(jnp.bfloat16)


def fused_backbone_head_feat(x_s2d, w2, b1, wh, bh, Ho, Wo, Ws):
    B, Lpad, K = x_s2d.shape
    _, _, Cb = w2.shape
    Ch = wh.shape[1]
    block_bytes = (Lpad * 128 * 4 + 4 * K * Cb * 4 + Cb * 4 +
                   Cb * Ch * 2 + Ch * 4 + Ho * Wo * Ch * 2)
    kernel = functools.partial(_backbone_head_feat_kernel, Ho=Ho, Wo=Wo, Ws=Ws)
    return pl.pallas_call(
        kernel,
        out_shape=jax.ShapeDtypeStruct((B, Ho, Wo, Ch), jnp.bfloat16),
        grid=(B,),
        in_specs=[
            pl.BlockSpec((1, Lpad, K), lambda b: (b, 0, 0)),
            pl.BlockSpec((4, K, Cb), lambda b: (0, 0, 0)),
            pl.BlockSpec((1, Cb), lambda b: (0, 0)),
            pl.BlockSpec((Cb, Ch), lambda b: (0, 0)),
            pl.BlockSpec((1, Ch), lambda b: (0, 0)),
        ],
        out_specs=pl.BlockSpec((1, Ho, Wo, Ch), lambda b: (b, 0, 0, 0)),
        compiler_params=pltpu.CompilerParams(
            dimension_semantics=("parallel",),
            vmem_limit_bytes=_vmem_limit_bytes(block_bytes)),
    )(x_s2d, w2, b1, wh, bh)


# --------------------------------------------------------------------------
# ToMP-style head kernel (one grid step per sequence). All hot paths on MXU.
# --------------------------------------------------------------------------
def _tomp_head_kernel(tf_ref, tp_ref, bb_ref, xf_ref, xp_ref,
                      wenc_ref, wregt_ref, beta_ref,
                      scores_ref, bbox_ref, *, n_train, n_test):
    # ---- probability-weighted target filter: MXU dots, no XLU reduce over C
    filt = None
    denom = 0.0
    for i in range(n_train):
        tp_i = tp_ref[0, pl.ds(i, 1), :]                     # (1, HW) f32
        tf_i = tf_ref[i, 0]                                  # (HW, C) bf16
        c = jnp.dot(tp_i.astype(jnp.bfloat16), tf_i,
                    preferred_element_type=jnp.float32)      # (1, C)
        filt = c if filt is None else filt + c
        denom = denom + jnp.sum(tp_i)
    filt = filt * (1.0 / (denom + 1e-6))                     # (1, C) f32

    # ---- box-conditioned modulation for the bbox branch
    bb = bb_ref[0]                                           # (n_train, 4) f32
    bb_mean = jnp.mean(bb, axis=0, keepdims=True)            # (1, 4)
    bb_emb = jnp.dot(bb_mean, wenc_ref[...],
                     preferred_element_type=jnp.float32)     # (1, C)
    filt_bb = filt + bb_emb

    beta = beta_ref[0, 0]                                    # SMEM scalar
    filt_b = filt.astype(jnp.bfloat16)
    wregt_b = wregt_ref[...].astype(jnp.bfloat16)            # (4, C)

    for t in range(n_test):
        xf_t = xf_ref[t, 0]                                  # (HW, C) bf16
        xp_t = xp_ref[0, pl.ds(t, 1), :]                     # (1, HW) f32
        # classification: correlation as an MXU dot (contract over C)
        s_t = lax.dot_general(filt_b, xf_t, (((1,), (1,)), ((), ())),
                              preferred_element_type=jnp.float32)   # (1, HW)
        scores_ref[0, pl.ds(t, 1), :] = s_t + beta * xp_t
        # bbox regression, written HW-last (lane dense output)
        mod = xf_t.astype(jnp.float32) * filt_bb             # (HW, C) f32
        bb_t = lax.dot_general(wregt_b, mod.astype(jnp.bfloat16),
                               (((1,), (1,)), ((), ())),
                               preferred_element_type=jnp.float32)  # (4, HW)
        bbox_ref[0, t] = bb_t


def tomp_head(train_feat, train_pro, train_bb, test_feat, test_pro,
              w_enc, w_reg_t, beta):
    n_train, S, HW, C = train_feat.shape
    n_test = test_feat.shape[0]
    block_bytes = ((n_train + n_test) * HW * C * 2 +
                   (n_train + n_test) * HW * 4 + n_train * 4 * 4 +
                   2 * 4 * C * 4 + n_test * HW * 4 + n_test * 4 * HW * 4)
    kernel = functools.partial(_tomp_head_kernel,
                               n_train=n_train, n_test=n_test)
    scores, bbox = pl.pallas_call(
        kernel,
        out_shape=(jax.ShapeDtypeStruct((S, n_test, HW), jnp.float32),
                   jax.ShapeDtypeStruct((S, n_test, 4, HW), jnp.float32)),
        grid=(S,),
        in_specs=[
            pl.BlockSpec((n_train, 1, HW, C), lambda s: (0, s, 0, 0)),
            pl.BlockSpec((1, n_train, HW), lambda s: (s, 0, 0)),
            pl.BlockSpec((1, n_train, 4), lambda s: (s, 0, 0)),
            pl.BlockSpec((n_test, 1, HW, C), lambda s: (0, s, 0, 0)),
            pl.BlockSpec((1, n_test, HW), lambda s: (s, 0, 0)),
            pl.BlockSpec((4, C), lambda s: (0, 0)),
            pl.BlockSpec((4, C), lambda s: (0, 0)),
            pl.BlockSpec(memory_space=pltpu.MemorySpace.SMEM),
        ],
        out_specs=[
            pl.BlockSpec((1, n_test, HW), lambda s: (s, 0, 0)),
            pl.BlockSpec((1, n_test, 4, HW), lambda s: (s, 0, 0, 0)),
        ],
        compiler_params=pltpu.CompilerParams(
            dimension_semantics=("parallel",),
            vmem_limit_bytes=_vmem_limit_bytes(block_bytes)),
    )(train_feat, train_pro, train_bb, test_feat, test_pro,
      w_enc, w_reg_t, beta)
    return scores, bbox


# --------------------------------------------------------------------------
# ProToMPnet wrapper (mirrors the PyTorch module's forward flow).
# --------------------------------------------------------------------------
class ProToMPnetPallas:
    def __init__(self, c_backbone=128, c_head=128, seed=42):
        key = jax.random.PRNGKey(seed)
        k1, k2, k3, k4, k5, k6 = jax.random.split(key, 6)
        self.c_backbone, self.c_head = c_backbone, c_head
        self.head_layer = ['layer3']
        w_conv = 0.1 * jax.random.normal(k1, (3, 3, 3, c_backbone), jnp.float32)
        self.w2 = pack_conv3x3_stride2_weights(w_conv)             # (4, 12, Cb)
        self.b1 = (0.01 * jax.random.normal(k2, (c_backbone,), jnp.float32)
                   ).reshape(1, c_backbone)
        self.w_head = (0.1 * jax.random.normal(
            k3, (c_backbone, c_head), jnp.float32)).astype(jnp.bfloat16)
        self.b_head = (0.01 * jax.random.normal(k4, (c_head,), jnp.float32)
                       ).reshape(1, c_head)
        self.w_enc = 0.1 * jax.random.normal(k5, (4, c_head), jnp.float32)
        self.w_reg_t = 0.1 * jax.random.normal(k6, (4, c_head), jnp.float32)
        self.beta = jnp.ones((1, 1), jnp.float32)

    def extract_backbone_features(self, im):
        # Backbone conv + head 1x1 conv are fused into one Pallas call (perf
        # review), so the returned 'layer3' map is already the head feature.
        xs, Ho, Wo, Ws = space_to_depth_conv_input(im)
        feat = fused_backbone_head_feat(xs, self.w2, self.b1, self.w_head,
                                        self.b_head, Ho, Wo, Ws)
        return {'layer3': feat}, Ho, Wo

    def get_backbone_head_feat(self, backbone_feat):
        feat = {l: backbone_feat[l] for l in self.head_layer}
        if len(self.head_layer) == 1:
            return feat[self.head_layer[0]]
        return feat

    def forward(self, train_imgs, test_imgs, train_pro, test_pro, train_bb):
        assert train_imgs.ndim == 5 and test_imgs.ndim == 5, \
            'Expect 5 dimensional inputs'
        n_train, S = train_imgs.shape[:2]
        n_test = test_imgs.shape[0]

        train_bf, Hf, Wf = self.extract_backbone_features(
            train_imgs.reshape(-1, *train_imgs.shape[-3:]))
        test_bf, _, _ = self.extract_backbone_features(
            test_imgs.reshape(-1, *test_imgs.shape[-3:]))

        HW, C = Hf * Wf, self.c_head
        # Free (layout-preserving) reshapes only; the per-sequence view is
        # taken by the head BlockSpec index_maps (no big-tensor transposes).
        tfh = self.get_backbone_head_feat(train_bf).reshape(n_train, S, HW, C)
        xfh = self.get_backbone_head_feat(test_bf).reshape(n_test, S, HW, C)
        # Small per-location / per-frame tensors: cheap host transposes.
        tpr = train_pro.reshape(n_train, S, HW).transpose(1, 0, 2)
        xpr = test_pro.reshape(n_test, S, HW).transpose(1, 0, 2)
        tbb = jnp.transpose(train_bb, (1, 0, 2))               # (S, n_train, 4)

        scores, bbox = tomp_head(tfh, tpr, tbb, xfh, xpr,
                                 self.w_enc, self.w_reg_t, self.beta)

        # scores (S, n_test, HW) -> (n_test, S, Hf, Wf)
        test_scores = scores.transpose(1, 0, 2).reshape(n_test, S, Hf, Wf)
        # bbox (S, n_test, 4, HW) -> (n_test, S, 4, Hf, Wf)
        bbox_preds = bbox.transpose(1, 0, 2, 3).reshape(n_test, S, 4, Hf, Wf)
        return test_scores, bbox_preds


if __name__ == "__main__":
    key = jax.random.PRNGKey(0)
    n_train, n_test, S, H, W = 2, 2, 2, 32, 32
    Hf = Wf = 16
    k1, k2, k3, k4, k5 = jax.random.split(key, 5)

    train_imgs = jax.random.normal(k1, (n_train, S, 3, H, W), jnp.float32)
    test_imgs = jax.random.normal(k2, (n_test, S, 3, H, W), jnp.float32)
    train_pro = jax.nn.softmax(
        jax.random.normal(k3, (n_train, S, Hf * Wf), jnp.float32), axis=-1
    ).reshape(n_train, S, Hf, Wf)
    test_pro = jax.nn.softmax(
        jax.random.normal(k4, (n_test, S, Hf * Wf), jnp.float32), axis=-1
    ).reshape(n_test, S, Hf, Wf)
    train_bb = jnp.abs(jax.random.normal(k5, (n_train, S, 4), jnp.float32)) * 4.0

    net = ProToMPnetPallas()
    test_scores, bbox_preds = net.forward(train_imgs, test_imgs,
                                          train_pro, test_pro, train_bb)
    jax.block_until_ready((test_scores, bbox_preds))

    assert test_scores.shape == (n_test, S, Hf, Wf)
    assert bbox_preds.shape == (n_test, S, 4, Hf, Wf)
    assert bool(jnp.all(jnp.isfinite(test_scores)))
    assert bool(jnp.all(jnp.isfinite(bbox_preds)))
    print("KERNEL_OK")
</pallas_src>

<mosaic_0001>
module attributes {stable_mosaic.version = 11 : i64} {
  func.func @_backbone_head_feat_kernel(%arg0: i32, %arg1: memref<1x306x12xf32, #tpu.memory_space<vmem>>, %arg2: memref<4x12x128xf32, #tpu.memory_space<vmem>>, %arg3: memref<1x128xf32, #tpu.memory_space<vmem>>, %arg4: memref<128x128xbf16, #tpu.memory_space<vmem>>, %arg5: memref<1x128xf32, #tpu.memory_space<vmem>>, %arg6: memref<1x16x16x128xbf16, #tpu.memory_space<vmem>>) attributes {dimension_semantics = [#tpu.dimension_semantics<parallel>], iteration_bounds = array<i64: 4>, scalar_prefetch = 0 : i64, scratch_operands = 0 : i64, tpu.core_type = #tpu.core_type<tc>, window_params = [{transform_indices = @transform_0, window_bounds = array<i64: 1, 306, 12>}, {pipeline_mode = #tpu.pipeline_mode<synchronous>, transform_indices = @transform_1, window_bounds = array<i64: 4, 12, 128>}, {pipeline_mode = #tpu.pipeline_mode<synchronous>, transform_indices = @transform_2, window_bounds = array<i64: 1, 128>}, {pipeline_mode = #tpu.pipeline_mode<synchronous>, transform_indices = @transform_3, window_bounds = array<i64: 128, 128>}, {pipeline_mode = #tpu.pipeline_mode<synchronous>, transform_indices = @transform_4, window_bounds = array<i64: 1, 128>}, {transform_indices = @transform_5, window_bounds = array<i64: 1, 16, 16, 128>}]} {
    %cst = arith.constant 0.000000e+00 : f32
    %0 = vector.broadcast %cst : f32 to vector<272x128xf32>
    %c0 = arith.constant 0 : index
    %c0_0 = arith.constant 0 : index
    %c0_1 = arith.constant 0 : index
    %1 = vector.load %arg1[%c0, %c0_0, %c0_1] : memref<1x306x12xf32, #tpu.memory_space<vmem>>, vector<1x272x12xf32>
    %2 = vector.shape_cast %1 : vector<1x272x12xf32> to vector<272x12xf32>
    %c0_2 = arith.constant 0 : index
    %c0_3 = arith.constant 0 : index
    %c0_4 = arith.constant 0 : index
    %3 = vector.load %arg2[%c0_2, %c0_3, %c0_4] : memref<4x12x128xf32, #tpu.memory_space<vmem>>, vector<1x12x128xf32>
    %4 = vector.shape_cast %3 : vector<1x12x128xf32> to vector<12x128xf32>
    %cst_5 = arith.constant dense<0.000000e+00> : vector<272x128xf32>
    %5 = tpu.matmul %2, %4, %cst_5 {dimension_numbers = #tpu.dot_dimension_numbers<[1], [0], [0], [1], [0, 0, 1, 1], [], []>} : vector<272x12xf32>, vector<12x128xf32>, vector<272x128xf32> -> vector<272x128xf32>
    %6 = arith.addf %0, %5 : vector<272x128xf32>
    %c0_6 = arith.constant 0 : index
    %c1 = arith.constant 1 : index
    %c0_7 = arith.constant 0 : index
    %7 = vector.load %arg1[%c0_6, %c1, %c0_7] : memref<1x306x12xf32, #tpu.memory_space<vmem>>, vector<1x272x12xf32>
    %8 = vector.shape_cast %7 : vector<1x272x12xf32> to vector<272x12xf32>
    %c1_8 = arith.constant 1 : index
    %c0_9 = arith.constant 0 : index
    %c0_10 = arith.constant 0 : index
    %9 = vector.load %arg2[%c1_8, %c0_9, %c0_10] : memref<4x12x128xf32, #tpu.memory_space<vmem>>, vector<1x12x128xf32>
    %10 = vector.shape_cast %9 : vector<1x12x128xf32> to vector<12x128xf32>
    %cst_11 = arith.constant dense<0.000000e+00> : vector<272x128xf32>
    %11 = tpu.matmul %8, %10, %cst_11 {dimension_numbers = #tpu.dot_dimension_numbers<[1], [0], [0], [1], [0, 0, 1, 1], [], []>} : vector<272x12xf32>, vector<12x128xf32>, vector<272x128xf32> -> vector<272x128xf32>
    %12 = arith.addf %6, %11 : vector<272x128xf32>
    %c0_12 = arith.constant 0 : index
    %c17 = arith.constant 17 : index
    %c0_13 = arith.constant 0 : index
    %13 = vector.load %arg1[%c0_12, %c17, %c0_13] : memref<1x306x12xf32, #tpu.memory_space<vmem>>, vector<1x272x12xf32>
    %14 = vector.shape_cast %13 : vector<1x272x12xf32> to vector<272x12xf32>
    %c2 = arith.constant 2 : index
    %c0_14 = arith.constant 0 : index
    %c0_15 = arith.constant 0 : index
    %15 = vector.load %arg2[%c2, %c0_14, %c0_15] : memref<4x12x128xf32, #tpu.memory_space<vmem>>, vector<1x12x128xf32>
    %16 = vector.shape_cast %15 : vector<1x12x128xf32> to vector<12x128xf32>
    %cst_16 = arith.constant dense<0.000000e+00> : vector<272x128xf32>
    %17 = tpu.matmul %14, %16, %cst_16 {dimension_numbers = #tpu.dot_dimension_numbers<[1], [0], [0], [1], [0, 0, 1, 1], [], []>} : vector<272x12xf32>, vector<12x128xf32>, vector<272x128xf32> -> vector<272x128xf32>
    %18 = arith.addf %12, %17 : vector<272x128xf32>
    %c0_17 = arith.constant 0 : index
    %c18 = arith.constant 18 : index
    %c0_18 = arith.constant 0 : index
    %19 = vector.load %arg1[%c0_17, %c18, %c0_18] : memref<1x306x12xf32, #tpu.memory_space<vmem>>, vector<1x272x12xf32>
    %20 = vector.shape_cast %19 : vector<1x272x12xf32> to vector<272x12xf32>
    %c3 = arith.constant 3 : index
    %c0_19 = arith.constant 0 : index
    %c0_20 = arith.constant 0 : index
    %21 = vector.load %arg2[%c3, %c0_19, %c0_20] : memref<4x12x128xf32, #tpu.memory_space<vmem>>, vector<1x12x128xf32>
    %22 = vector.shape_cast %21 : vector<1x12x128xf32> to vector<12x128xf32>
    %cst_21 = arith.constant dense<0.000000e+00> : vector<272x128xf32>
    %23 = tpu.matmul %20, %22, %cst_21 {dimension_numbers = #tpu.dot_dimension_numbers<[1], [0], [0], [1], [0, 0, 1, 1], [], []>} : vector<272x12xf32>, vector<12x128xf32>, vector<272x128xf32> -> vector<272x128xf32>
    %24 = arith.addf %18, %23 : vector<272x128xf32>
    %c0_22 = arith.constant 0 : index
    %c0_23 = arith.constant 0 : index
    %25 = vector.load %arg3[%c0_22, %c0_23] : memref<1x128xf32, #tpu.memory_space<vmem>>, vector<1x128xf32>
    %26 = vector.broadcast %25 : vector<1x128xf32> to vector<272x128xf32>
    %27 = arith.addf %24, %26 : vector<272x128xf32>
    %cst_24 = arith.constant 0.000000e+00 : f32
    %28 = vector.broadcast %cst_24 : f32 to vector<272x128xf32>
    %29 = arith.maximumf %27, %28 : vector<272x128xf32>
    %30 = arith.truncf %29 : vector<272x128xf32> to vector<272x128xbf16>
    %c0_25 = arith.constant 0 : index
    %c0_26 = arith.constant 0 : index
    %31 = vector.load %arg4[%c0_25, %c0_26] : memref<128x128xbf16, #tpu.memory_space<vmem>>, vector<128x128xbf16>
    %cst_27 = arith.constant dense<0.000000e+00> : vector<272x128xf32>
    %32 = tpu.matmul %30, %31, %cst_27 {dimension_numbers = #tpu.dot_dimension_numbers<[1], [0], [0], [1], [0, 0, 1, 1], [], []>} : vector<272x128xbf16>, vector<128x128xbf16>, vector<272x128xf32> -> vector<272x128xf32>
    %c0_28 = arith.constant 0 : index
    %c0_29 = arith.constant 0 : index
    %33 = vector.load %arg5[%c0_28, %c0_29] : memref<1x128xf32, #tpu.memory_space<vmem>>, vector<1x128xf32>
    %34 = vector.broadcast %33 : vector<1x128xf32> to vector<272x128xf32>
    %35 = arith.addf %32, %34 : vector<272x128xf32>
    %36 = vector.extract_strided_slice %35 {offsets = [0, 0], sizes = [16, 128], strides = [1, 1]} : vector<272x128xf32> to vector<16x128xf32>
    %37 = arith.truncf %36 : vector<16x128xf32> to vector<16x128xbf16>
    %c0_30 = arith.constant 0 : index
    %c0_31 = arith.constant 0 : index
    %c0_32 = arith.constant 0 : index
    %c0_33 = arith.constant 0 : index
    %38 = vector.load %arg6[%c0_30, %c0_31, %c0_32, %c0_33] : memref<1x16x16x128xbf16, #tpu.memory_space<vmem>>, vector<1x1x16x128xbf16>
    %39 = vector.shape_cast %38 : vector<1x1x16x128xbf16> to vector<16x128xbf16>
    %40 = vector.shape_cast %37 : vector<16x128xbf16> to vector<1x1x16x128xbf16>
    tpu.vector_store %arg6[%c0_30, %c0_31, %c0_32, %c0_33], %40 {strides = array<i32>} : memref<1x16x16x128xbf16, #tpu.memory_space<vmem>>, vector<1x1x16x128xbf16>,
    %41 = vector.extract_strided_slice %35 {offsets = [17, 0], sizes = [16, 128], strides = [1, 1]} : vector<272x128xf32> to vector<16x128xf32>
    %42 = arith.truncf %41 : vector<16x128xf32> to vector<16x128xbf16>
    %c0_34 = arith.constant 0 : index
    %c1_35 = arith.constant 1 : index
    %c0_36 = arith.constant 0 : index
    %c0_37 = arith.constant 0 : index
    %43 = vector.load %arg6[%c0_34, %c1_35, %c0_36, %c0_37] : memref<1x16x16x128xbf16, #tpu.memory_space<vmem>>, vector<1x1x16x128xbf16>
    %44 = vector.shape_cast %43 : vector<1x1x16x128xbf16> to vector<16x128xbf16>
    %45 = vector.shape_cast %42 : vector<16x128xbf16> to vector<1x1x16x128xbf16>
    tpu.vector_store %arg6[%c0_34, %c1_35, %c0_36, %c0_37], %45 {strides = array<i32>} : memref<1x16x16x128xbf16, #tpu.memory_space<vmem>>, vector<1x1x16x128xbf16>,
    %46 = vector.extract_strided_slice %35 {offsets = [34, 0], sizes = [16, 128], strides = [1, 1]} : vector<272x128xf32> to vector<16x128xf32>
    %47 = arith.truncf %46 : vector<16x128xf32> to vector<16x128xbf16>
    %c0_38 = arith.constant 0 : index
    %c2_39 = arith.constant 2 : index
    %c0_40 = arith.constant 0 : index
    %c0_41 = arith.constant 0 : index
    %48 = vector.load %arg6[%c0_38, %c2_39, %c0_40, %c0_41] : memref<1x16x16x128xbf16, #tpu.memory_space<vmem>>, vector<1x1x16x128xbf16>
    %49 = vector.shape_cast %48 : vector<1x1x16x128xbf16> to vector<16x128xbf16>
    %50 = vector.shape_cast %47 : vector<16x128xbf16> to vector<1x1x16x128xbf16>
    tpu.vector_store %arg6[%c0_38, %c2_39, %c0_40, %c0_41], %50 {strides = array<i32>} : memref<1x16x16x128xbf16, #tpu.memory_space<vmem>>, vector<1x1x16x128xbf16>,
    %51 = vector.extract_strided_slice %35 {offsets = [51, 0], sizes = [16, 128], strides = [1, 1]} : vector<272x128xf32> to vector<16x128xf32>
    %52 = arith.truncf %51 : vector<16x128xf32> to vector<16x128xbf16>
    %c0_42 = arith.constant 0 : index
    %c3_43 = arith.constant 3 : index
    %c0_44 = arith.constant 0 : index
    %c0_45 = arith.constant 0 : index
    %53 = vector.load %arg6[%c0_42, %c3_43, %c0_44, %c0_45] : memref<1x16x16x128xbf16, #tpu.memory_space<vmem>>, vector<1x1x16x128xbf16>
    %54 = vector.shape_cast %53 : vector<1x1x16x128xbf16> to vector<16x128xbf16>
    %55 = vector.shape_cast %52 : vector<16x128xbf16> to vector<1x1x16x128xbf16>
    tpu.vector_store %arg6[%c0_42, %c3_43, %c0_44, %c0_45], %55 {strides = array<i32>} : memref<1x16x16x128xbf16, #tpu.memory_space<vmem>>, vector<1x1x16x128xbf16>,
    %56 = vector.extract_strided_slice %35 {offsets = [68, 0], sizes = [16, 128], strides = [1, 1]} : vector<272x128xf32> to vector<16x128xf32>
    %57 = arith.truncf %56 : vector<16x128xf32> to vector<16x128xbf16>
    %c0_46 = arith.constant 0 : index
    %c4 = arith.constant 4 : index
    %c0_47 = arith.constant 0 : index
    %c0_48 = arith.constant 0 : index
    %58 = vector.load %arg6[%c0_46, %c4, %c0_47, %c0_48] : memref<1x16x16x128xbf16, #tpu.memory_space<vmem>>, vector<1x1x16x128xbf16>
    %59 = vector.shape_cast %58 : vector<1x1x16x128xbf16> to vector<16x128xbf16>
    %60 = vector.shape_cast %57 : vector<16x128xbf16> to vector<1x1x16x128xbf16>
    tpu.vector_store %arg6[%c0_46, %c4, %c0_47, %c0_48], %60 {strides = array<i32>} : memref<1x16x16x128xbf16, #tpu.memory_space<vmem>>, vector<1x1x16x128xbf16>,
    %61 = vector.extract_strided_slice %35 {offsets = [85, 0], sizes = [16, 128], strides = [1, 1]} : vector<272x128xf32> to vector<16x128xf32>
    %62 = arith.truncf %61 : vector<16x128xf32> to vector<16x128xbf16>
    %c0_49 = arith.constant 0 : index
    %c5 = arith.constant 5 : index
    %c0_50 = arith.constant 0 : index
    %c0_51 = arith.constant 0 : index
    %63 = vector.load %arg6[%c0_49, %c5, %c0_50, %c0_51] : memref<1x16x16x128xbf16, #tpu.memory_space<vmem>>, vector<1x1x16x128xbf16>
    %64 = vector.shape_cast %63 : vector<1x1x16x128xbf16> to vector<16x128xbf16>
    %65 = vector.shape_cast %62 : vector<16x128xbf16> to vector<1x1x16x128xbf16>
    tpu.vector_store %arg6[%c0_49, %c5, %c0_50, %c0_51], %65 {strides = array<i32>} : memref<1x16x16x128xbf16, #tpu.memory_space<vmem>>, vector<1x1x16x128xbf16>,
    %66 = vector.extract_strided_slice %35 {offsets = [102, 0], sizes = [16, 128], strides = [1, 1]} : vector<272x128xf32> to vector<16x128xf32>
    %67 = arith.truncf %66 : vector<16x128xf32> to vector<16x128xbf16>
    %c0_52 = arith.constant 0 : index
    %c6 = arith.constant 6 : index
    %c0_53 = arith.constant 0 : index
    %c0_54 = arith.constant 0 : index
    %68 = vector.load %arg6[%c0_52, %c6, %c0_53, %c0_54] : memref<1x16x16x128xbf16, #tpu.memory_space<vmem>>, vector<1x1x16x128xbf16>
    %69 = vector.shape_cast %68 : vector<1x1x16x128xbf16> to vector<16x128xbf16>
    %70 = vector.shape_cast %67 : vector<16x128xbf16> to vector<1x1x16x128xbf16>
    tpu.vector_store %arg6[%c0_52, %c6, %c0_53, %c0_54], %70 {strides = array<i32>} : memref<1x16x16x128xbf16, #tpu.memory_space<vmem>>, vector<1x1x16x128xbf16>,
    %71 = vector.extract_strided_slice %35 {offsets = [119, 0], sizes = [16, 128], strides = [1, 1]} : vector<272x128xf32> to vector<16x128xf32>
    %72 = arith.truncf %71 : vector<16x128xf32> to vector<16x128xbf16>
    %c0_55 = arith.constant 0 : index
    %c7 = arith.constant 7 : index
    %c0_56 = arith.constant 0 : index
    %c0_57 = arith.constant 0 : index
    %73 = vector.load %arg6[%c0_55, %c7, %c0_56, %c0_57] : memref<1x16x16x128xbf16, #tpu.memory_space<vmem>>, vector<1x1x16x128xbf16>
    %74 = vector.shape_cast %73 : vector<1x1x16x128xbf16> to vector<16x128xbf16>
    %75 = vector.shape_cast %72 : vector<16x128xbf16> to vector<1x1x16x128xbf16>
    tpu.vector_store %arg6[%c0_55, %c7, %c0_56, %c0_57], %75 {strides = array<i32>} : memref<1x16x16x128xbf16, #tpu.memory_space<vmem>>, vector<1x1x16x128xbf16>,
    %76 = vector.extract_strided_slice %35 {offsets = [136, 0], sizes = [16, 128], strides = [1, 1]} : vector<272x128xf32> to vector<16x128xf32>
    %77 = arith.truncf %76 : vector<16x128xf32> to vector<16x128xbf16>
    %c0_58 = arith.constant 0 : index
    %c8 = arith.constant 8 : index
    %c0_59 = arith.constant 0 : index
    %c0_60 = arith.constant 0 : index
    %78 = vector.load %arg6[%c0_58, %c8, %c0_59, %c0_60] : memref<1x16x16x128xbf16, #tpu.memory_space<vmem>>, vector<1x1x16x128xbf16>
    %79 = vector.shape_cast %78 : vector<1x1x16x128xbf16> to vector<16x128xbf16>
    %80 = vector.shape_cast %77 : vector<16x128xbf16> to vector<1x1x16x128xbf16>
    tpu.vector_store %arg6[%c0_58, %c8, %c0_59, %c0_60], %80 {strides = array<i32>} : memref<1x16x16x128xbf16, #tpu.memory_space<vmem>>, vector<1x1x16x128xbf16>,
    %81 = vector.extract_strided_slice %35 {offsets = [153, 0], sizes = [16, 128], strides = [1, 1]} : vector<272x128xf32> to vector<16x128xf32>
    %82 = arith.truncf %81 : vector<16x128xf32> to vector<16x128xbf16>
    %c0_61 = arith.constant 0 : index
    %c9 = arith.constant 9 : index
    %c0_62 = arith.constant 0 : index
    %c0_63 = arith.constant 0 : index
    %83 = vector.load %arg6[%c0_61, %c9, %c0_62, %c0_63] : memref<1x16x16x128xbf16, #tpu.memory_space<vmem>>, vector<1x1x16x128xbf16>
    %84 = vector.shape_cast %83 : vector<1x1x16x128xbf16> to vector<16x128xbf16>
    %85 = vector.shape_cast %82 : vector<16x128xbf16> to vector<1x1x16x128xbf16>
    tpu.vector_store %arg6[%c0_61, %c9, %c0_62, %c0_63], %85 {strides = array<i32>} : memref<1x16x16x128xbf16, #tpu.memory_space<vmem>>, vector<1x1x16x128xbf16>,
    %86 = vector.extract_strided_slice %35 {offsets = [170, 0], sizes = [16, 128], strides = [1, 1]} : vector<272x128xf32> to vector<16x128xf32>
    %87 = arith.truncf %86 : vector<16x128xf32> to vector<16x128xbf16>
    %c0_64 = arith.constant 0 : index
    %c10 = arith.constant 10 : index
    %c0_65 = arith.constant 0 : index
    %c0_66 = arith.constant 0 : index
    %88 = vector.load %arg6[%c0_64, %c10, %c0_65, %c0_66] : memref<1x16x16x128xbf16, #tpu.memory_space<vmem>>, vector<1x1x16x128xbf16>
    %89 = vector.shape_cast %88 : vector<1x1x16x128xbf16> to vector<16x128xbf16>
    %90 = vector.shape_cast %87 : vector<16x128xbf16> to vector<1x1x16x128xbf16>
    tpu.vector_store %arg6[%c0_64, %c10, %c0_65, %c0_66], %90 {strides = array<i32>} : memref<1x16x16x128xbf16, #tpu.memory_space<vmem>>, vector<1x1x16x128xbf16>,
    %91 = vector.extract_strided_slice %35 {offsets = [187, 0], sizes = [16, 128], strides = [1, 1]} : vector<272x128xf32> to vector<16x128xf32>
    %92 = arith.truncf %91 : vector<16x128xf32> to vector<16x128xbf16>
    %c0_67 = arith.constant 0 : index
    %c11 = arith.constant 11 : index
    %c0_68 = arith.constant 0 : index
    %c0_69 = arith.constant 0 : index
    %93 = vector.load %arg6[%c0_67, %c11, %c0_68, %c0_69] : memref<1x16x16x128xbf16, #tpu.memory_space<vmem>>, vector<1x1x16x128xbf16>
    %94 = vector.shape_cast %93 : vector<1x1x16x128xbf16> to vector<16x128xbf16>
    %95 = vector.shape_cast %92 : vector<16x128xbf16> to vector<1x1x16x128xbf16>
    tpu.vector_store %arg6[%c0_67, %c11, %c0_68, %c0_69], %95 {strides = array<i32>} : memref<1x16x16x128xbf16, #tpu.memory_space<vmem>>, vector<1x1x16x128xbf16>,
    %96 = vector.extract_strided_slice %35 {offsets = [204, 0], sizes = [16, 128], strides = [1, 1]} : vector<272x128xf32> to vector<16x128xf32>
    %97 = arith.truncf %96 : vector<16x128xf32> to vector<16x128xbf16>
    %c0_70 = arith.constant 0 : index
    %c12 = arith.constant 12 : index
    %c0_71 = arith.constant 0 : index
    %c0_72 = arith.constant 0 : index
    %98 = vector.load %arg6[%c0_70, %c12, %c0_71, %c0_72] : memref<1x16x16x128xbf16, #tpu.memory_space<vmem>>, vector<1x1x16x128xbf16>
    %99 = vector.shape_cast %98 : vector<1x1x16x128xbf16> to vector<16x128xbf16>
    %100 = vector.shape_cast %97 : vector<16x128xbf16> to vector<1x1x16x128xbf16>
    tpu.vector_store %arg6[%c0_70, %c12, %c0_71, %c0_72], %100 {strides = array<i32>} : memref<1x16x16x128xbf16, #tpu.memory_space<vmem>>, vector<1x1x16x128xbf16>,
    %101 = vector.extract_strided_slice %35 {offsets = [221, 0], sizes = [16, 128], strides = [1, 1]} : vector<272x128xf32> to vector<16x128xf32>
    %102 = arith.truncf %101 : vector<16x128xf32> to vector<16x128xbf16>
    %c0_73 = arith.constant 0 : index
    %c13 = arith.constant 13 : index
    %c0_74 = arith.constant 0 : index
    %c0_75 = arith.constant 0 : index
    %103 = vector.load %arg6[%c0_73, %c13, %c0_74, %c0_75] : memref<1x16x16x128xbf16, #tpu.memory_space<vmem>>, vector<1x1x16x128xbf16>
    %104 = vector.shape_cast %103 : vector<1x1x16x128xbf16> to vector<16x128xbf16>
    %105 = vector.shape_cast %102 : vector<16x128xbf16> to vector<1x1x16x128xbf16>
    tpu.vector_store %arg6[%c0_73, %c13, %c0_74, %c0_75], %105 {strides = array<i32>} : memref<1x16x16x128xbf16, #tpu.memory_space<vmem>>, vector<1x1x16x128xbf16>,
    %106 = vector.extract_strided_slice %35 {offsets = [238, 0], sizes = [16, 128], strides = [1, 1]} : vector<272x128xf32> to vector<16x128xf32>
    %107 = arith.truncf %106 : vector<16x128xf32> to vector<16x128xbf16>
    %c0_76 = arith.constant 0 : index
    %c14 = arith.constant 14 : index
    %c0_77 = arith.constant 0 : index
    %c0_78 = arith.constant 0 : index
    %108 = vector.load %arg6[%c0_76, %c14, %c0_77, %c0_78] : memref<1x16x16x128xbf16, #tpu.memory_space<vmem>>, vector<1x1x16x128xbf16>
    %109 = vector.shape_cast %108 : vector<1x1x16x128xbf16> to vector<16x128xbf16>
    %110 = vector.shape_cast %107 : vector<16x128xbf16> to vector<1x1x16x128xbf16>
    tpu.vector_store %arg6[%c0_76, %c14, %c0_77, %c0_78], %110 {strides = array<i32>} : memref<1x16x16x128xbf16, #tpu.memory_space<vmem>>, vector<1x1x16x128xbf16>,
    %111 = vector.extract_strided_slice %35 {offsets = [255, 0], sizes = [16, 128], strides = [1, 1]} : vector<272x128xf32> to vector<16x128xf32>
    %112 = arith.truncf %111 : vector<16x128xf32> to vector<16x128xbf16>
    %c0_79 = arith.constant 0 : index
    %c15 = arith.constant 15 : index
    %c0_80 = arith.constant 0 : index
    %c0_81 = arith.constant 0 : index
    %113 = vector.load %arg6[%c0_79, %c15, %c0_80, %c0_81] : memref<1x16x16x128xbf16, #tpu.memory_space<vmem>>, vector<1x1x16x128xbf16>
    %114 = vector.shape_cast %113 : vector<1x1x16x128xbf16> to vector<16x128xbf16>
    %115 = vector.shape_cast %112 : vector<16x128xbf16> to vector<1x1x16x128xbf16>
    tpu.vector_store %arg6[%c0_79, %c15, %c0_80, %c0_81], %115 {strides = array<i32>} : memref<1x16x16x128xbf16, #tpu.memory_space<vmem>>, vector<1x1x16x128xbf16>,
    return
  }
  func.func @transform_0(%arg0: i32) -> (i32, i32, i32) {
    %c0_i32 = arith.constant 0 : i32
    %c0_i32_0 = arith.constant 0 : i32
    %c0_i32_1 = arith.constant 0 : i32
    return %arg0, %c0_i32, %c0_i32_0 : i32, i32, i32
  }
  func.func @transform_1(%arg0: i32) -> (i32, i32, i32) {
    %c0_i32 = arith.constant 0 : i32
    %c0_i32_0 = arith.constant 0 : i32
    %c0_i32_1 = arith.constant 0 : i32
    %c0_i32_2 = arith.constant 0 : i32
    return %c0_i32, %c0_i32_0, %c0_i32_1 : i32, i32, i32
  }
  func.func @transform_2(%arg0: i32) -> (i32, i32) {
    %c0_i32 = arith.constant 0 : i32
    %c0_i32_0 = arith.constant 0 : i32
    %c0_i32_1 = arith.constant 0 : i32
    return %c0_i32, %c0_i32_0 : i32, i32
  }
  func.func @transform_3(%arg0: i32) -> (i32, i32) {
    %c0_i32 = arith.constant 0 : i32
    %c0_i32_0 = arith.constant 0 : i32
    %c0_i32_1 = arith.constant 0 : i32
    return %c0_i32, %c0_i32_0 : i32, i32
  }
  func.func @transform_4(%arg0: i32) -> (i32, i32) {
    %c0_i32 = arith.constant 0 : i32
    %c0_i32_0 = arith.constant 0 : i32
    %c0_i32_1 = arith.constant 0 : i32
    return %c0_i32, %c0_i32_0 : i32, i32
  }
  func.func @transform_5(%arg0: i32) -> (i32, i32, i32, i32) {
    %c0_i32 = arith.constant 0 : i32
    %c0_i32_0 = arith.constant 0 : i32
    %c0_i32_1 = arith.constant 0 : i32
    %c0_i32_2 = arith.constant 0 : i32
    return %arg0, %c0_i32, %c0_i32_0, %c0_i32_1 : i32, i32, i32, i32
  }
}

</mosaic_0001>

<llo_original>
// kernel: tpu_custom_call.1
$region0: #{tpu_custom_call.1}
  #allocation0 [shape = 'u32[]', space=smem, size = 0x4, offset = 0x4, fixed_abs, tag = 'smem constant byte address 0x4 - core index']
  #allocation1 [shape = 'u32[72,128]{1,0:T(1,128)}', space=vmem, size = 0x9000, scoped, tag = 'internal scratch']
  %s0 = inlined_call_operand.vmem [shape: f32[4,306,12], index: 0, kind: input, shape index: {}]
  %s1 = inlined_call_operand.vmem [shape: f32[4,12,128], index: 1, kind: input, shape index: {}]
  %s2 = inlined_call_operand.vmem [shape: f32[1,128], index: 2, kind: input, shape index: {}]
  %s3 = inlined_call_operand.vmem [shape: bf16[128,128], index: 3, kind: input, shape index: {}]
  %s4 = inlined_call_operand.vmem [shape: f32[1,128], index: 4, kind: input, shape index: {}]
  %s5 = inlined_call_operand.hbm [shape: bf16[4,16,16,128], index: 5, kind: output, shape index: {}]
  %s6 = sld [smem:[#allocation0]]
  $region53: #{tpu_custom_call.1} parent=0
    _
  %s8 = ssub.s32 1, %s6
  %s9 = scalar_select 0, %s8, %s6
  $region1: #{tpu_custom_call.1} parent=0
    #allocation2 [shape = 'u8[131072]{0}', space=vmem, size = 0x20000, scoped, tag = 'output window, operand 0']
    #allocation3 [shape = 's32[2]{0}', space=sflag, size = 0x8, scoped, tag = 'scoped memory for tpu_custom_call.1']
    %10 = vsyncpa [#allocation3], 0
    %s11 = scalar_lea.sflag [#allocation3], 1
    %12 = vsyncpa %s11, 0
    loop: start=0, step=1, limit=6
    $region2: #{tpu_custom_call.1} parent=1 // loop_pre_header
      _
    $region3: #{tpu_custom_call.1} parent=1 // loop_header
      %s14 = sphi 0, %s18
      %p15 = scmp.ge.s32.totalorder %s14, 6
      %s24 = sphi 0, %s26
      %s27 = sphi 0, %s24
      %s28 = sphi 0, %s27
      %s44 = sphi 0, %s28
      %s48 = sphi 0, %s48
      %s50 = sphi 0, %s48
      %s51 = sphi 0, %s50
      %s65 = sphi 0, %s51
      %s69 = sphi 0, %s69
      %s71 = sphi 0, %s69
      %s72 = sphi 0, %s71
      %s86 = sphi 0, %s72
      %s90 = sphi 0, %s90
      %s92 = sphi 0, %s90
      %s93 = sphi 0, %s92
      %s107 = sphi 0, %s93
      %s111 = sphi 0, %s111
      %s113 = sphi 0, %s111
      %s114 = sphi 0, %s113
      %s128 = sphi 0, %s114
      %s134 = sphi 0, %s136
      %s137 = sphi 0, %s134
      %s138 = sphi 0, %s137
      %s154 = sphi 0, %s138
    $region4: #{tpu_custom_call.1} parent=1 // loop_header_branch
      %17 = sbr.rel (%p15) target = $region8
    $region5: #{tpu_custom_call.1} parent=1 // loop_body
      %s19 = ssub.s32 %s14, 1
      %s20 = ssub.s32 %s14, 2
      %s21 = sadd.s32 %s14, 1
      %s22 = ssub.s32 %s14, %s21
      %p23 = scmp.eq.s32.totalorder %s22, 0
      %s25 = sadd.s32 %s24, 1
      %s26 = scalar_select %p23, %s24, %s25
      %p29 = pneg %p23
      %p30 = scmp.eq.s32.totalorder %s14, 3
      %p31 = por %p29, %p30
      %p32 = scmp.ne.s32.totalorder %s24, %s27
      %p33 = scmp.eq.s32.totalorder %s14, 0
      %p34 = por %p32, %p33
      %p35 = scmp.ne.s32.totalorder %s24, %s27
      %p36 = scmp.eq.s32.totalorder %s19, 3
      %p37 = por %p35, %p36
      %p38 = scmp.ne.s32.totalorder %s27, %s28
      %p39 = scmp.eq.s32.totalorder %s19, 0
      %p40 = por %p38, %p39
      %p41 = scmp.ne.s32.totalorder %s27, %s28
      %p42 = scmp.eq.s32.totalorder %s20, 3
      %p43 = por %p41, %p42
      %p45 = scmp.ne.s32.totalorder %s28, %s44
      %p46 = scmp.eq.s32.totalorder %s20, 0
      %p47 = por %p45, %p46
      %s49 = sadd.s32 %s48, 1
      %p52 = scmp.eq.s32.totalorder %s14, 3
      %p53 = scmp.ne.s32.totalorder %s48, %s50
      %p54 = scmp.eq.s32.totalorder %s14, 0
      %p55 = por %p53, %p54
      %p56 = scmp.ne.s32.totalorder %s48, %s50
      %p57 = scmp.eq.s32.totalorder %s19, 3
      %p58 = por %p56, %p57
      %p59 = scmp.ne.s32.totalorder %s50, %s51
      %p60 = scmp.eq.s32.totalorder %s19, 0
      %p61 = por %p59, %p60
      %p62 = scmp.ne.s32.totalorder %s50, %s51
      %p63 = scmp.eq.s32.totalorder %s20, 3
      %p64 = por %p62, %p63
      %p66 = scmp.ne.s32.totalorder %s51, %s65
      %p67 = scmp.eq.s32.totalorder %s20, 0
      %p68 = por %p66, %p67
      %s70 = sadd.s32 %s69, 1
      %p73 = scmp.eq.s32.totalorder %s14, 3
      %p74 = scmp.ne.s32.totalorder %s69, %s71
      %p75 = scmp.eq.s32.totalorder %s14, 0
      %p76 = por %p74, %p75
      %p77 = scmp.ne.s32.totalorder %s69, %s71
      %p78 = scmp.eq.s32.totalorder %s19, 3
      %p79 = por %p77, %p78
      %p80 = scmp.ne.s32.totalorder %s71, %s72
      %p81 = scmp.eq.s32.totalorder %s19, 0
      %p82 = por %p80, %p81
      %p83 = scmp.ne.s32.totalorder %s71, %s72
      %p84 = scmp.eq.s32.totalorder %s20, 3
      %p85 = por %p83, %p84
      %p87 = scmp.ne.s32.totalorder %s72, %s86
      %p88 = scmp.eq.s32.totalorder %s20, 0
      %p89 = por %p87, %p88
      %s91 = sadd.s32 %s90, 1
      %p94 = scmp.eq.s32.totalorder %s14, 3
      %p95 = scmp.ne.s32.totalorder %s90, %s92
      %p96 = scmp.eq.s32.totalorder %s14, 0
      %p97 = por %p95, %p96
      %p98 = scmp.ne.s32.totalorder %s90, %s92
      %p99 = scmp.eq.s32.totalorder %s19, 3
      %p100 = por %p98, %p99
      %p101 = scmp.ne.s32.totalorder %s92, %s93
      %p102 = scmp.eq.s32.totalorder %s19, 0
      %p103 = por %p101, %p102
      %p104 = scmp.ne.s32.totalorder %s92, %s93
      %p105 = scmp.eq.s32.totalorder %s20, 3
      %p106 = por %p104, %p105
      %p108 = scmp.ne.s32.totalorder %s93, %s107
      %p109 = scmp.eq.s32.totalorder %s20, 0
      %p110 = por %p108, %p109
      %s112 = sadd.s32 %s111, 1
      %p115 = scmp.eq.s32.totalorder %s14, 3
      %p116 = scmp.ne.s32.totalorder %s111, %s113
      %p117 = scmp.eq.s32.totalorder %s14, 0
      %p118 = por %p116, %p117
      %p119 = scmp.ne.s32.totalorder %s111, %s113
      %p120 = scmp.eq.s32.totalorder %s19, 3
      %p121 = por %p119, %p120
      %p122 = scmp.ne.s32.totalorder %s113, %s114
      %p123 = scmp.eq.s32.totalorder %s19, 0
      %p124 = por %p122, %p123
      %p125 = scmp.ne.s32.totalorder %s113, %s114
      %p126 = scmp.eq.s32.totalorder %s20, 3
      %p127 = por %p125, %p126
      %p129 = scmp.ne.s32.totalorder %s114, %s128
      %p130 = scmp.eq.s32.totalorder %s20, 0
      %p131 = por %p129, %p130
      %s132 = ssub.s32 %s14, %s21
      %p133 = scmp.eq.s32.totalorder %s132, 0
      %s135 = sadd.s32 %s134, 1
      %s136 = scalar_select %p133, %s134, %s135
      %p139 = pneg %p133
      %p140 = scmp.eq.s32.totalorder %s14, 3
      %p141 = por %p139, %p140
      %p142 = scmp.ne.s32.totalorder %s134, %s137
      %p143 = scmp.eq.s32.totalorder %s14, 0
      %p144 = por %p142, %p143
      %p145 = scmp.ne.s32.totalorder %s134, %s137
      %p146 = scmp.eq.s32.totalorder %s19, 3
      %p147 = por %p145, %p146
      %p148 = scmp.ne.s32.totalorder %s137, %s138
      %p149 = scmp.eq.s32.totalorder %s19, 0
      %p150 = por %p148, %p149
      %p151 = scmp.ne.s32.totalorder %s137, %s138
      %p152 = scmp.eq.s32.totalorder %s20, 3
      %p153 = por %p151, %p152
      %p155 = scmp.ne.s32.totalorder %s138, %s154
      %p156 = scmp.eq.s32.totalorder %s20, 0
      %p157 = por %p155, %p156
      %p158 = scmp.le.s32.totalorder 1, %s14
      %p159 = scmp.lt.s32.totalorder %s14, 5
      %p160 = pnand %p158, %p159
      %p161 = pneg %p160
      // Predicated region
      $region9: #{tpu_custom_call.1} parent=5 // pred_check
        _
      $region10: #{tpu_custom_call.1} parent=5 // pred_check_branch
        %163 = sbr.rel (%p160) target = $region12
      $region11: #{tpu_custom_call.1} parent=5 // pred_region
        %s164 = ssub.s32 %s14, 1
        // Predicated region
        $region13: #{tpu_custom_call.1} parent=11 // pred_check
          %p165 = pneg %p61
        $region14: #{tpu_custom_call.1} parent=11 // pred_check_branch
          %167 = sbr.rel (%p165) target = $region16
        $region15: #{tpu_custom_call.1} parent=11 // pred_region
          _
        $region16: #{tpu_custom_call.1} parent=11 // pred_fallthru
          _
        // Predicated region
        $region17: #{tpu_custom_call.1} parent=11 // pred_check
          %p168 = pneg %p82
        $region18: #{tpu_custom_call.1} parent=11 // pred_check_branch
          %170 = sbr.rel (%p168) target = $region20
        $region19: #{tpu_custom_call.1} parent=11 // pred_region
          _
        $region20: #{tpu_custom_call.1} parent=11 // pred_fallthru
          _
        // Predicated region
        $region21: #{tpu_custom_call.1} parent=11 // pred_check
          %p171 = pneg %p103
        $region22: #{tpu_custom_call.1} parent=11 // pred_check_branch
          %173 = sbr.rel (%p171) target = $region24
        $region23: #{tpu_custom_call.1} parent=11 // pred_region
          _
        $region24: #{tpu_custom_call.1} parent=11 // pred_fallthru
          _
        // Predicated region
        $region25: #{tpu_custom_call.1} parent=11 // pred_check
          %p174 = pneg %p124
        $region26: #{tpu_custom_call.1} parent=11 // pred_check_branch
          %176 = sbr.rel (%p174) target = $region28
        $region27: #{tpu_custom_call.1} parent=11 // pred_region
          _
        $region28: #{tpu_custom_call.1} parent=11 // pred_fallthru
          _
      $region12: #{tpu_custom_call.1} parent=5 // pred_fallthru
        _
      %p177 = scmp.lt.s32.totalorder %s14, 4
      // Predicated region
      $region29: #{tpu_custom_call.1} parent=5 // pred_check
        %p178 = pneg %p177
      $region30: #{tpu_custom_call.1} parent=5 // pred_check_branch
        %180 = sbr.rel (%p178) target = $region32
      $region31: #{tpu_custom_call.1} parent=5 // pred_region
        // Predicated region
        $region33: #{tpu_custom_call.1} parent=31 // pred_check
          %p181 = pneg %p34
        $region34: #{tpu_custom_call.1} parent=31 // pred_check_branch
          %183 = sbr.rel (%p181) target = $region36
        $region35: #{tpu_custom_call.1} parent=31 // pred_region
          %p184 = scmp.lt.s32.totalorder %s14, 3
          %s185 = scalar_select %p184, %s14, 3
          %s186 = smul.addr %s185, 39
          %s187 = smul.addr %s186, 8
          %s188 = scalar_lea.vmem %s0, %s187
        $region36: #{tpu_custom_call.1} parent=31 // pred_fallthru
          _
      $region32: #{tpu_custom_call.1} parent=5 // pred_fallthru
        _
      %p189 = scmp.le.s32.totalorder 1, %s14
      %p190 = scmp.lt.s32.totalorder %s14, 5
      %p191 = pnand %p189, %p190
      %p192 = pneg %p191
      // Predicated region
      $region37: #{tpu_custom_call.1} parent=5 // pred_check
        _
      $region38: #{tpu_custom_call.1} parent=5 // pred_check_branch
        %194 = sbr.rel (%p191) target = $region40
      $region39: #{tpu_custom_call.1} parent=5 // pred_region
        %s195 = ssub.s32 %s14, 1
        %p196 = scmp.lt.s32.totalorder %s19, 3
        %s197 = scalar_select %p196, %s19, 3
        %s198 = smul.addr %s197, 39
        %s199 = smul.addr %s198, 8
        %s200 = scalar_lea.vmem %s0, %s199
        %p201 = pneg %p40
        %p202 = pneg %p37
        %p203 = pneg %p61
        %p204 = pneg %p58
        %p205 = pneg %p82
        %p206 = pneg %p79
        %p207 = pneg %p103
        %p208 = pneg %p100
        %p209 = pneg %p124
        %p210 = pneg %p121
        %p211 = pneg %p150
        %p212 = pneg %p147
        %s213 = sand.u32 %s137, 1
        %s214 = scalar_lea.sflag [#allocation3], %s213
        %s215 = sand.u32 %s137, 1
        %s216 = smul.addr %s215, 128
        %s217 = scalar_lea.vmem [#allocation2], %s216
        %p218 = scmp.lt.s32.totalorder %s19, 3
        %s219 = scalar_select %p218, %s19, 3
        %s220 = smul.addr %s219, 39
        %s221 = smul.addr %s220, 8
        %s222 = scalar_lea.vmem %s0, %s221
        %v223 = vld [vmem:[%s222] sm:$0xff]
        %v224 = vld [vmem:[%s222 + $0x8] sm:$0xff]
        %v225 = vld [vmem:[%s222 + $0x10] sm:$0xff]
        %v226 = vld [vmem:[%s222 + $0x18] sm:$0xff]
        %v227 = vld [vmem:[%s222 + $0x20] sm:$0xff]
        %v228 = vld [vmem:[%s222 + $0x28] sm:$0xff]
        %v229 = vld [vmem:[%s222 + $0x30] sm:$0xff]
        %v230 = vld [vmem:[%s222 + $0x38] sm:$0xff]
        %v231 = vld [vmem:[%s222 + $0x40] sm:$0xff]
        %v232 = vld [vmem:[%s222 + $0x48] sm:$0xff]
        %v233 = vld [vmem:[%s222 + $0x50] sm:$0xff]
        %v234 = vld [vmem:[%s222 + $0x58] sm:$0xff]
        %v235 = vld [vmem:[%s222 + $0x60] sm:$0xff]
        %v236 = vld [vmem:[%s222 + $0x68] sm:$0xff]
        %v237 = vld [vmem:[%s222 + $0x70] sm:$0xff]
        %v238 = vld [vmem:[%s222 + $0x78] sm:$0xff]
        %v239 = vld [vmem:[%s222 + $0x80] sm:$0xff]
        %v240 = vld [vmem:[%s222 + $0x88] sm:$0xff]
        %v241 = vld [vmem:[%s222 + $0x90] sm:$0xff]
        %v242 = vld [vmem:[%s222 + $0x98] sm:$0xff]
        %v243 = vld [vmem:[%s222 + $0xa0] sm:$0xff]
        %v244 = vld [vmem:[%s222 + $0xa8] sm:$0xff]
        %v245 = vld [vmem:[%s222 + $0xb0] sm:$0xff]
        %v246 = vld [vmem:[%s222 + $0xb8] sm:$0xff]
        %v247 = vld [vmem:[%s222 + $0xc0] sm:$0xff]
        %v248 = vld [vmem:[%s222 + $0xc8] sm:$0xff]
        %v249 = vld [vmem:[%s222 + $0xd0] sm:$0xff]
        %v250 = vld [vmem:[%s222 + $0xd8] sm:$0xff]
        %v251 = vld [vmem:[%s222 + $0xe0] sm:$0xff]
        %v252 = vld [vmem:[%s222 + $0xe8] sm:$0xff]
        %v253 = vld [vmem:[%s222 + $0xf0] sm:$0xff]
        %v254 = vld [vmem:[%s222 + $0xf8] sm:$0xff]
        %v255 = vld [vmem:[%s222 + $0x100] sm:$0xff]
        %v256 = vld [vmem:[%s222 + $0x108] sm:$0xff]
        %v257 = vld [vmem:[%s1] sm:$0xff]
        %v258 = vld [vmem:[%s1 + $0x8] sm:$0xf]
        %v259 = vld [vmem:[%s222 + $0x1] sm:$0xff]
        %v260 = vld [vmem:[%s222 + $0x9] sm:$0xff]
        %v261 = vld [vmem:[%s222 + $0x11] sm:$0xff]
        %v262 = vld [vmem:[%s222 + $0x19] sm:$0xff]
        %v263 = vld [vmem:[%s222 + $0x21] sm:$0xff]
        %v264 = vld [vmem:[%s222 + $0x29] sm:$0xff]
        %v265 = vld [vmem:[%s222 + $0x31] sm:$0xff]
        %v266 = vld [vmem:[%s222 + $0x39] sm:$0xff]
        %v267 = vld [vmem:[%s222 + $0x41] sm:$0xff]
        %v268 = vld [vmem:[%s222 + $0x49] sm:$0xff]
        %v269 = vld [vmem:[%s222 + $0x51] sm:$0xff]
        %v270 = vld [vmem:[%s222 + $0x59] sm:$0xff]
        %v271 = vld [vmem:[%s222 + $0x61] sm:$0xff]
        %v272 = vld [vmem:[%s222 + $0x69] sm:$0xff]
        %v273 = vld [vmem:[%s222 + $0x71] sm:$0xff]
        %v274 = vld [vmem:[%s222 + $0x79] sm:$0xff]
        %v275 = vld [vmem:[%s222 + $0x81] sm:$0xff]
        %v276 = vld [vmem:[%s222 + $0x89] sm:$0xff]
        %v277 = vld [vmem:[%s222 + $0x91] sm:$0xff]
        %v278 = vld [vmem:[%s222 + $0x99] sm:$0xff]
        %v279 = vld [vmem:[%s222 + $0xa1] sm:$0xff]
        %v280 = vld [vmem:[%s222 + $0xa9] sm:$0xff]
        %v281 = vld [vmem:[%s222 + $0xb1] sm:$0xff]
        %v282 = vld [vmem:[%s222 + $0xb9] sm:$0xff]
        %v283 = vld [vmem:[%s222 + $0xc1] sm:$0xff]
        %v284 = vld [vmem:[%s222 + $0xc9] sm:$0xff]
        %v285 = vld [vmem:[%s222 + $0xd1] sm:$0xff]
        %v286 = vld [vmem:[%s222 + $0xd9] sm:$0xff]
        %v287 = vld [vmem:[%s222 + $0xe1] sm:$0xff]
        %v288 = vld [vmem:[%s222 + $0xe9] sm:$0xff]
        %v289 = vld [vmem:[%s222 + $0xf1] sm:$0xff]
        %v290 = vld [vmem:[%s222 + $0xf9] sm:$0xff]
        %v291 = vld [vmem:[%s222 + $0x101] sm:$0xff]
        %v292 = vld [vmem:[%s222 + $0x109] sm:$0xff]
        %s293 = scalar_lea.vmem %s1, 16
        %v294 = vld [vmem:[%s293] sm:$0xff]
        %v295 = vld [vmem:[%s293 + $0x8] sm:$0xf]
        %vm296 = vcmask 97280
        %v298 = vsel %vm296, %v259, 0
        %v301 = vsel %vm296, %v260, 0
        %v304 = vsel %vm296, %v261, 0
        %v307 = vsel %vm296, %v262, 0
        %v310 = vsel %vm296, %v263, 0
        %v313 = vsel %vm296, %v264, 0
        %v316 = vsel %vm296, %v265, 0
        %v319 = vsel %vm296, %v266, 0
        %v322 = vsel %vm296, %v267, 0
        %v325 = vsel %vm296, %v268, 0
        %v328 = vsel %vm296, %v269, 0
        %v331 = vsel %vm296, %v270, 0
        %v334 = vsel %vm296, %v271, 0
        %v337 = vsel %vm296, %v272, 0
        %v340 = vsel %vm296, %v273, 0
        %v343 = vsel %vm296, %v274, 0
        %v346 = vsel %vm296, %v275, 0
        %v349 = vsel %vm296, %v276, 0
        %v352 = vsel %vm296, %v277, 0
        %v355 = vsel %vm296, %v278, 0
        %v358 = vsel %vm296, %v279, 0
        %v361 = vsel %vm296, %v280, 0
        %v364 = vsel %vm296, %v281, 0
        %v367 = vsel %vm296, %v282, 0
        %v370 = vsel %vm296, %v283, 0
        %v373 = vsel %vm296, %v284, 0
        %v376 = vsel %vm296, %v285, 0
        %v379 = vsel %vm296, %v286, 0
        %v382 = vsel %vm296, %v287, 0
        %v385 = vsel %vm296, %v288, 0
        %v388 = vsel %vm296, %v289, 0
        %v391 = vsel %vm296, %v290, 0
        %v394 = vsel %vm296, %v291, 0
        %v397 = vsel %vm296, %v292, 0
        %vm399 = vcmask 1043456
        %v401 = vsel %vm399, %v295, 0
        %403 = vmatpush.msra.mxu0 0.0
        %404 = vmatpush.msra.mxu0 0.0
        %405 = vmatpush.msra.mxu0 0.0
        %406 = vmatpush.msra.mxu0 0.0
        %407 = vmatpush.msra.mxu0 0.0
        %408 = vmatpush.msra.mxu0 0.0
        %409 = vmatpush.msra.mxu0 0.0
        %410 = vmatpush.msra.mxu0 0.0
        %411 = vmatpush.msra.mxu0 0.0
        %412 = vmatpush.msra.mxu0 0.0
        %413 = vmatpush.msra.mxu0 0.0
        %414 = vmatpush.msra.mxu0 0.0
        %415 = vmatpush.msra.mxu0 0.0
        %416 = vmatpush.msra.mxu0 0.0
        %417 = vmatpush.msra.mxu0 %v401
        %418 = vmatpush.msra.mxu0 %v294
        %419 = vmatmul.f32.gmra.mxu0 %v298
        %v420 = vpop.f32.mrf.mxu0
        %v421 = vadd.f32 0.0, %v420
        %422 = vmatmul.f32.gmra.mxu0 %v301
        %v423 = vpop.f32.mrf.mxu0
        %v424 = vadd.f32 0.0, %v423
        %425 = vmatmul.f32.gmra.mxu0 %v304
        %v426 = vpop.f32.mrf.mxu0
        %v427 = vadd.f32 0.0, %v426
        %428 = vmatmul.f32.gmra.mxu0 %v307
        %v429 = vpop.f32.mrf.mxu0
        %v430 = vadd.f32 0.0, %v429
        %431 = vmatmul.f32.gmra.mxu0 %v310
        %v432 = vpop.f32.mrf.mxu0
        %v433 = vadd.f32 0.0, %v432
        %434 = vmatmul.f32.gmra.mxu0 %v313
        %v435 = vpop.f32.mrf.mxu0
        %v436 = vadd.f32 0.0, %v435
        %437 = vmatmul.f32.gmra.mxu0 %v316
        %v438 = vpop.f32.mrf.mxu0
        %v439 = vadd.f32 0.0, %v438
        %440 = vmatmul.f32.gmra.mxu0 %v319
        %v441 = vpop.f32.mrf.mxu0
        %v442 = vadd.f32 0.0, %v441
        %443 = vmatmul.f32.gmra.mxu0 %v322
        %v444 = vpop.f32.mrf.mxu0
        %v445 = vadd.f32 0.0, %v444
        %446 = vmatmul.f32.gmra.mxu0 %v325
        %v447 = vpop.f32.mrf.mxu0
        %v448 = vadd.f32 0.0, %v447
        %449 = vmatmul.f32.gmra.mxu0 %v328
        %v450 = vpop.f32.mrf.mxu0
        %v451 = vadd.f32 0.0, %v450
        %452 = vmatmul.f32.gmra.mxu0 %v331
        %v453 = vpop.f32.mrf.mxu0
        %v454 = vadd.f32 0.0, %v453
        %455 = vmatmul.f32.gmra.mxu0 %v334
        %v456 = vpop.f32.mrf.mxu0
        %v457 = vadd.f32 0.0, %v456
        %458 = vmatmul.f32.gmra.mxu0 %v337
        %v459 = vpop.f32.mrf.mxu0
        %v460 = vadd.f32 0.0, %v459
        %461 = vmatmul.f32.gmra.mxu0 %v340
        %v462 = vpop.f32.mrf.mxu0
        %v463 = vadd.f32 0.0, %v462
        %464 = vmatmul.f32.gmra.mxu0 %v343
        %v465 = vpop.f32.mrf.mxu0
        %v466 = vadd.f32 0.0, %v465
        %467 = vmatmul.f32.gmra.mxu0 %v346
        %v468 = vpop.f32.mrf.mxu0
        %v469 = vadd.f32 0.0, %v468
        %470 = vmatmul.f32.gmra.mxu0 %v349
        %v471 = vpop.f32.mrf.mxu0
        %v472 = vadd.f32 0.0, %v471
        %473 = vmatmul.f32.gmra.mxu0 %v352
        %v474 = vpop.f32.mrf.mxu0
        %v475 = vadd.f32 0.0, %v474
        %476 = vmatmul.f32.gmra.mxu0 %v355
        %v477 = vpop.f32.mrf.mxu0
        %v478 = vadd.f32 0.0, %v477
        %479 = vmatmul.f32.gmra.mxu0 %v358
        %v480 = vpop.f32.mrf.mxu0
        %v481 = vadd.f32 0.0, %v480
        %482 = vmatmul.f32.gmra.mxu0 %v361
        %v483 = vpop.f32.mrf.mxu0
        %v484 = vadd.f32 0.0, %v483
        %485 = vmatmul.f32.gmra.mxu0 %v364
        %v486 = vpop.f32.mrf.mxu0
        %v487 = vadd.f32 0.0, %v486
        %488 = vmatmul.f32.gmra.mxu0 %v367
        %v489 = vpop.f32.mrf.mxu0
        %v490 = vadd.f32 0.0, %v489
        %491 = vmatmul.f32.gmra.mxu0 %v370
        %v492 = vpop.f32.mrf.mxu0
        %v493 = vadd.f32 0.0, %v492
        %494 = vmatmul.f32.gmra.mxu0 %v373
        %v495 = vpop.f32.mrf.mxu0
        %v496 = vadd.f32 0.0, %v495
        %497 = vmatmul.f32.gmra.mxu0 %v376
        %v498 = vpop.f32.mrf.mxu0
        %v499 = vadd.f32 0.0, %v498
        %500 = vmatmul.f32.gmra.mxu0 %v379
        %v501 = vpop.f32.mrf.mxu0
        %v502 = vadd.f32 0.0, %v501
        %503 = vmatmul.f32.gmra.mxu0 %v382
        %v504 = vpop.f32.mrf.mxu0
        %v505 = vadd.f32 0.0, %v504
        %506 = vmatmul.f32.gmra.mxu0 %v385
        %v507 = vpop.f32.mrf.mxu0
        %v508 = vadd.f32 0.0, %v507
        %509 = vmatmul.f32.gmra.mxu0 %v388
        %v510 = vpop.f32.mrf.mxu0
        %v511 = vadd.f32 0.0, %v510
        %512 = vmatmul.f32.gmra.mxu0 %v391
        %v513 = vpop.f32.mrf.mxu0
        %v514 = vadd.f32 0.0, %v513
        %515 = vmatmul.f32.gmra.mxu0 %v394
        %v516 = vpop.f32.mrf.mxu0
        %v517 = vadd.f32 0.0, %v516
        %518 = vmatmul.f32.gmra.mxu0 %v397
        %v519 = vpop.f32.mrf.mxu0
        %v520 = vadd.f32 0.0, %v519
        %521 = vdwg.mxu0
        %v523 = vsel %vm296, %v223, 0
        %v526 = vsel %vm296, %v224, 0
        %v529 = vsel %vm296, %v225, 0
        %v532 = vsel %vm296, %v226, 0
        %v535 = vsel %vm296, %v227, 0
        %v538 = vsel %vm296, %v228, 0
        %v541 = vsel %vm296, %v229, 0
        %v544 = vsel %vm296, %v230, 0
        %v547 = vsel %vm296, %v231, 0
        %v550 = vsel %vm296, %v232, 0
        %v553 = vsel %vm296, %v233, 0
        %v556 = vsel %vm296, %v234, 0
        %v559 = vsel %vm296, %v235, 0
        %v562 = vsel %vm296, %v236, 0
        %v565 = vsel %vm296, %v237, 0
        %v568 = vsel %vm296, %v238, 0
        %v571 = vsel %vm296, %v239, 0
        %v574 = vsel %vm296, %v240, 0
        %v577 = vsel %vm296, %v241, 0
        %v580 = vsel %vm296, %v242, 0
        %v583 = vsel %vm296, %v243, 0
        %v586 = vsel %vm296, %v244, 0
        %v589 = vsel %vm296, %v245, 0
        %v592 = vsel %vm296, %v246, 0
        %v595 = vsel %vm296, %v247, 0
        %v598 = vsel %vm296, %v248, 0
        %v601 = vsel %vm296, %v249, 0
        %v604 = vsel %vm296, %v250, 0
        %v607 = vsel %vm296, %v251, 0
        %v610 = vsel %vm296, %v252, 0
        %v613 = vsel %vm296, %v253, 0
        %v616 = vsel %vm296, %v254, 0
        %v619 = vsel %vm296, %v255, 0
        %v622 = vsel %vm296, %v256, 0
        %v625 = vsel %vm399, %v258, 0
        %627 = vmatpush.msra.mxu0 0.0
        %628 = vmatpush.msra.mxu0 0.0
        %629 = vmatpush.msra.mxu0 0.0
        %630 = vmatpush.msra.mxu0 0.0
        %631 = vmatpush.msra.mxu0 0.0
        %632 = vmatpush.msra.mxu0 0.0
        %633 = vmatpush.msra.mxu0 0.0
        %634 = vmatpush.msra.mxu0 0.0
        %635 = vmatpush.msra.mxu0 0.0
        %636 = vmatpush.msra.mxu0 0.0
        %637 = vmatpush.msra.mxu0 0.0
        %638 = vmatpush.msra.mxu0 0.0
        %639 = vmatpush.msra.mxu0 0.0
        %640 = vmatpush.msra.mxu0 0.0
        %641 = vmatpush.msra.mxu0 %v625
        %642 = vmatpush.msra.mxu0 %v257
        %643 = vmatmul.f32.gmra.mxu0 %v523
        %v644 = vpop.f32.mrf.mxu0
        %v645 = vadd.f32 %v421, %v644
        %646 = vmatmul.f32.gmra.mxu0 %v526
        %v647 = vpop.f32.mrf.mxu0
        %v648 = vadd.f32 %v424, %v647
        %649 = vmatmul.f32.gmra.mxu0 %v529
        %v650 = vpop.f32.mrf.mxu0
        %v651 = vadd.f32 %v427, %v650
        %652 = vmatmul.f32.gmra.mxu0 %v532
        %v653 = vpop.f32.mrf.mxu0
        %v654 = vadd.f32 %v430, %v653
        %655 = vmatmul.f32.gmra.mxu0 %v535
        %v656 = vpop.f32.mrf.mxu0
        %v657 = vadd.f32 %v433, %v656
        %658 = vmatmul.f32.gmra.mxu0 %v538
        %v659 = vpop.f32.mrf.mxu0
        %v660 = vadd.f32 %v436, %v659
        %661 = vmatmul.f32.gmra.mxu0 %v541
        %v662 = vpop.f32.mrf.mxu0
        %v663 = vadd.f32 %v439, %v662
        %664 = vmatmul.f32.gmra.mxu0 %v544
        %v665 = vpop.f32.mrf.mxu0
        %v666 = vadd.f32 %v442, %v665
        %667 = vmatmul.f32.gmra.mxu0 %v547
        %v668 = vpop.f32.mrf.mxu0
        %v669 = vadd.f32 %v445, %v668
        %670 = vmatmul.f32.gmra.mxu0 %v550
        %v671 = vpop.f32.mrf.mxu0
        %v672 = vadd.f32 %v448, %v671
        %673 = vmatmul.f32.gmra.mxu0 %v553
        %v674 = vpop.f32.mrf.mxu0
        %v675 = vadd.f32 %v451, %v674
        %676 = vmatmul.f32.gmra.mxu0 %v556
        %v677 = vpop.f32.mrf.mxu0
        %v678 = vadd.f32 %v454, %v677
        %679 = vmatmul.f32.gmra.mxu0 %v559
        %v680 = vpop.f32.mrf.mxu0
        %v681 = vadd.f32 %v457, %v680
        %682 = vmatmul.f32.gmra.mxu0 %v562
        %v683 = vpop.f32.mrf.mxu0
        %v684 = vadd.f32 %v460, %v683
        %685 = vmatmul.f32.gmra.mxu0 %v565
        %v686 = vpop.f32.mrf.mxu0
        %v687 = vadd.f32 %v463, %v686
        %688 = vmatmul.f32.gmra.mxu0 %v568
        %v689 = vpop.f32.mrf.mxu0
        %v690 = vadd.f32 %v466, %v689
        %691 = vmatmul.f32.gmra.mxu0 %v571
        %v692 = vpop.f32.mrf.mxu0
        %v693 = vadd.f32 %v469, %v692
        %694 = vmatmul.f32.gmra.mxu0 %v574
        %v695 = vpop.f32.mrf.mxu0
        %v696 = vadd.f32 %v472, %v695
        %697 = vmatmul.f32.gmra.mxu0 %v577
        %v698 = vpop.f32.mrf.mxu0
        %v699 = vadd.f32 %v475, %v698
        %700 = vmatmul.f32.gmra.mxu0 %v580
        %v701 = vpop.f32.mrf.mxu0
        %v702 = vadd.f32 %v478, %v701
        %703 = vmatmul.f32.gmra.mxu0 %v583
        %v704 = vpop.f32.mrf.mxu0
        %v705 = vadd.f32 %v481, %v704
        %706 = vmatmul.f32.gmra.mxu0 %v586
        %v707 = vpop.f32.mrf.mxu0
        %v708 = vadd.f32 %v484, %v707
        %709 = vmatmul.f32.gmra.mxu0 %v589
        %v710 = vpop.f32.mrf.mxu0
        %v711 = vadd.f32 %v487, %v710
        %712 = vmatmul.f32.gmra.mxu0 %v592
        %v713 = vpop.f32.mrf.mxu0
        %v714 = vadd.f32 %v490, %v713
        %715 = vmatmul.f32.gmra.mxu0 %v595
        %v716 = vpop.f32.mrf.mxu0
        %v717 = vadd.f32 %v493, %v716
        %718 = vmatmul.f32.gmra.mxu0 %v598
        %v719 = vpop.f32.mrf.mxu0
        %v720 = vadd.f32 %v496, %v719
        %721 = vmatmul.f32.gmra.mxu0 %v601
        %v722 = vpop.f32.mrf.mxu0
        %v723 = vadd.f32 %v499, %v722
        %724 = vmatmul.f32.gmra.mxu0 %v604
        %v725 = vpop.f32.mrf.mxu0
        %v726 = vadd.f32 %v502, %v725
        %727 = vmatmul.f32.gmra.mxu0 %v607
        %v728 = vpop.f32.mrf.mxu0
        %v729 = vadd.f32 %v505, %v728
        %730 = vmatmul.f32.gmra.mxu0 %v610
        %v731 = vpop.f32.mrf.mxu0
        %v732 = vadd.f32 %v508, %v731
        %733 = vmatmul.f32.gmra.mxu0 %v613
        %v734 = vpop.f32.mrf.mxu0
        %v735 = vadd.f32 %v511, %v734
        %736 = vmatmul.f32.gmra.mxu0 %v616
        %v737 = vpop.f32.mrf.mxu0
        %v738 = vadd.f32 %v514, %v737
        %739 = vmatmul.f32.gmra.mxu0 %v619
        %v740 = vpop.f32.mrf.mxu0
        %v741 = vadd.f32 %v517, %v740
        %742 = vmatmul.f32.gmra.mxu0 %v622
        %v743 = vpop.f32.mrf.mxu0
        %v744 = vadd.f32 %v520, %v743
        %745 = vdwg.mxu0
        %v746 = vld [vmem:[%s222 + $0x11] sm:$0xff]
        %v747 = vld [vmem:[%s222 + $0x19] sm:$0xff]
        %v748 = vld [vmem:[%s222 + $0x21] sm:$0xff]
        %v749 = vld [vmem:[%s222 + $0x29] sm:$0xff]
        %v750 = vld [vmem:[%s222 + $0x31] sm:$0xff]
        %v751 = vld [vmem:[%s222 + $0x39] sm:$0xff]
        %v752 = vld [vmem:[%s222 + $0x41] sm:$0xff]
        %v753 = vld [vmem:[%s222 + $0x49] sm:$0xff]
        %v754 = vld [vmem:[%s222 + $0x51] sm:$0xff]
        %v755 = vld [vmem:[%s222 + $0x59] sm:$0xff]
        %v756 = vld [vmem:[%s222 + $0x61] sm:$0xff]
        %v757 = vld [vmem:[%s222 + $0x69] sm:$0xff]
        %v758 = vld [vmem:[%s222 + $0x71] sm:$0xff]
        %v759 = vld [vmem:[%s222 + $0x79] sm:$0xff]
        %v760 = vld [vmem:[%s222 + $0x81] sm:$0xff]
        %v761 = vld [vmem:[%s222 + $0x89] sm:$0xff]
        %v762 = vld [vmem:[%s222 + $0x91] sm:$0xff]
        %v763 = vld [vmem:[%s222 + $0x99] sm:$0xff]
        %v764 = vld [vmem:[%s222 + $0xa1] sm:$0xff]
        %v765 = vld [vmem:[%s222 + $0xa9] sm:$0xff]
        %v766 = vld [vmem:[%s222 + $0xb1] sm:$0xff]
        %v767 = vld [vmem:[%s222 + $0xb9] sm:$0xff]
        %v768 = vld [vmem:[%s222 + $0xc1] sm:$0xff]
        %v769 = vld [vmem:[%s222 + $0xc9] sm:$0xff]
        %v770 = vld [vmem:[%s222 + $0xd1] sm:$0xff]
        %v771 = vld [vmem:[%s222 + $0xd9] sm:$0xff]
        %v772 = vld [vmem:[%s222 + $0xe1] sm:$0xff]
        %v773 = vld [vmem:[%s222 + $0xe9] sm:$0xff]
        %v774 = vld [vmem:[%s222 + $0xf1] sm:$0xff]
        %v775 = vld [vmem:[%s222 + $0xf9] sm:$0xff]
        %v776 = vld [vmem:[%s222 + $0x101] sm:$0xff]
        %v777 = vld [vmem:[%s222 + $0x109] sm:$0xff]
        %v778 = vld [vmem:[%s222 + $0x111] sm:$0xff]
        %v779 = vld [vmem:[%s222 + $0x119] sm:$0xff]
        %s780 = scalar_lea.vmem %s1, 32
        %v781 = vld [vmem:[%s780] sm:$0xff]
        %v782 = vld [vmem:[%s780 + $0x8] sm:$0xf]
        %v784 = vsel %vm296, %v746, 0
        %v787 = vsel %vm296, %v747, 0
        %v790 = vsel %vm296, %v748, 0
        %v793 = vsel %vm296, %v749, 0
        %v796 = vsel %vm296, %v750, 0
        %v799 = vsel %vm296, %v751, 0
        %v802 = vsel %vm296, %v752, 0
        %v805 = vsel %vm296, %v753, 0
        %v808 = vsel %vm296, %v754, 0
        %v811 = vsel %vm296, %v755, 0
        %v814 = vsel %vm296, %v756, 0
        %v817 = vsel %vm296, %v757, 0
        %v820 = vsel %vm296, %v758, 0
        %v823 = vsel %vm296, %v759, 0
        %v826 = vsel %vm296, %v760, 0
        %v829 = vsel %vm296, %v761, 0
        %v832 = vsel %vm296, %v762, 0
        %v835 = vsel %vm296, %v763, 0
        %v838 = vsel %vm296, %v764, 0
        %v841 = vsel %vm296, %v765, 0
        %v844 = vsel %vm296, %v766, 0
        %v847 = vsel %vm296, %v767, 0
        %v850 = vsel %vm296, %v768, 0
        %v853 = vsel %vm296, %v769, 0
        %v856 = vsel %vm296, %v770, 0
        %v859 = vsel %vm296, %v771, 0
        %v862 = vsel %vm296, %v772, 0
        %v865 = vsel %vm296, %v773, 0
        %v868 = vsel %vm296, %v774, 0
        %v871 = vsel %vm296, %v775, 0
        %v874 = vsel %vm296, %v776, 0
        %v877 = vsel %vm296, %v777, 0
        %v880 = vsel %vm296, %v778, 0
        %v883 = vsel %vm296, %v779, 0
        %v886 = vsel %vm399, %v782, 0
        %888 = vmatpush.msra.mxu0 0.0
        %889 = vmatpush.msra.mxu0 0.0
        %890 = vmatpush.msra.mxu0 0.0
        %891 = vmatpush.msra.mxu0 0.0
        %892 = vmatpush.msra.mxu0 0.0
        %893 = vmatpush.msra.mxu0 0.0
        %894 = vmatpush.msra.mxu0 0.0
        %895 = vmatpush.msra.mxu0 0.0
        %896 = vmatpush.msra.mxu0 0.0
        %897 = vmatpush.msra.mxu0 0.0
        %898 = vmatpush.msra.mxu0 0.0
        %899 = vmatpush.msra.mxu0 0.0
        %900 = vmatpush.msra.mxu0 0.0
        %901 = vmatpush.msra.mxu0 0.0
        %902 = vmatpush.msra.mxu0 %v886
        %903 = vmatpush.msra.mxu0 %v781
        %904 = vmatmul.f32.gmra.mxu0 %v784
        %v905 = vpop.f32.mrf.mxu0
        %v906 = vadd.f32 0.0, %v905
        %907 = vmatmul.f32.gmra.mxu0 %v787
        %v908 = vpop.f32.mrf.mxu0
        %v909 = vadd.f32 0.0, %v908
        %910 = vmatmul.f32.gmra.mxu0 %v790
        %v911 = vpop.f32.mrf.mxu0
        %v912 = vadd.f32 0.0, %v911
        %913 = vmatmul.f32.gmra.mxu0 %v793
        %v914 = vpop.f32.mrf.mxu0
        %v915 = vadd.f32 0.0, %v914
        %916 = vmatmul.f32.gmra.mxu0 %v796
        %v917 = vpop.f32.mrf.mxu0
        %v918 = vadd.f32 0.0, %v917
        %919 = vmatmul.f32.gmra.mxu0 %v799
        %v920 = vpop.f32.mrf.mxu0
        %v921 = vadd.f32 0.0, %v920
        %922 = vmatmul.f32.gmra.mxu0 %v802
        %v923 = vpop.f32.mrf.mxu0
        %v924 = vadd.f32 0.0, %v923
        %925 = vmatmul.f32.gmra.mxu0 %v805
        %v926 = vpop.f32.mrf.mxu0
        %v927 = vadd.f32 0.0, %v926
        %928 = vmatmul.f32.gmra.mxu0 %v808
        %v929 = vpop.f32.mrf.mxu0
        %v930 = vadd.f32 0.0, %v929
        %931 = vmatmul.f32.gmra.mxu0 %v811
        %v932 = vpop.f32.mrf.mxu0
        %v933 = vadd.f32 0.0, %v932
        %934 = vmatmul.f32.gmra.mxu0 %v814
        %v935 = vpop.f32.mrf.mxu0
        %v936 = vadd.f32 0.0, %v935
        %937 = vmatmul.f32.gmra.mxu0 %v817
        %v938 = vpop.f32.mrf.mxu0
        %v939 = vadd.f32 0.0, %v938
        %940 = vmatmul.f32.gmra.mxu0 %v820
        %v941 = vpop.f32.mrf.mxu0
        %v942 = vadd.f32 0.0, %v941
        %943 = vmatmul.f32.gmra.mxu0 %v823
        %v944 = vpop.f32.mrf.mxu0
        %v945 = vadd.f32 0.0, %v944
        %946 = vmatmul.f32.gmra.mxu0 %v826
        %v947 = vpop.f32.mrf.mxu0
        %v948 = vadd.f32 0.0, %v947
        %949 = vmatmul.f32.gmra.mxu0 %v829
        %v950 = vpop.f32.mrf.mxu0
        %v951 = vadd.f32 0.0, %v950
        %952 = vmatmul.f32.gmra.mxu0 %v832
        %v953 = vpop.f32.mrf.mxu0
        %v954 = vadd.f32 0.0, %v953
        %955 = vmatmul.f32.gmra.mxu0 %v835
        %v956 = vpop.f32.mrf.mxu0
        %v957 = vadd.f32 0.0, %v956
        %958 = vmatmul.f32.gmra.mxu0 %v838
        %v959 = vpop.f32.mrf.mxu0
        %v960 = vadd.f32 0.0, %v959
        %961 = vmatmul.f32.gmra.mxu0 %v841
        %v962 = vpop.f32.mrf.mxu0
        %v963 = vadd.f32 0.0, %v962
        %964 = vmatmul.f32.gmra.mxu0 %v844
        %v965 = vpop.f32.mrf.mxu0
        %v966 = vadd.f32 0.0, %v965
        %967 = vmatmul.f32.gmra.mxu0 %v847
        %v968 = vpop.f32.mrf.mxu0
        %v969 = vadd.f32 0.0, %v968
        %970 = vmatmul.f32.gmra.mxu0 %v850
        %v971 = vpop.f32.mrf.mxu0
        %v972 = vadd.f32 0.0, %v971
        %973 = vmatmul.f32.gmra.mxu0 %v853
        %v974 = vpop.f32.mrf.mxu0
        %v975 = vadd.f32 0.0, %v974
        %976 = vmatmul.f32.gmra.mxu0 %v856
        %v977 = vpop.f32.mrf.mxu0
        %v978 = vadd.f32 0.0, %v977
        %979 = vmatmul.f32.gmra.mxu0 %v859
        %v980 = vpop.f32.mrf.mxu0
        %v981 = vadd.f32 0.0, %v980
        %982 = vmatmul.f32.gmra.mxu0 %v862
        %v983 = vpop.f32.mrf.mxu0
        %v984 = vadd.f32 0.0, %v983
        %985 = vmatmul.f32.gmra.mxu0 %v865
        %v986 = vpop.f32.mrf.mxu0
        %v987 = vadd.f32 0.0, %v986
        %988 = vmatmul.f32.gmra.mxu0 %v868
        %v989 = vpop.f32.mrf.mxu0
        %v990 = vadd.f32 0.0, %v989
        %991 = vmatmul.f32.gmra.mxu0 %v871
        %v992 = vpop.f32.mrf.mxu0
        %v993 = vadd.f32 0.0, %v992
        %994 = vmatmul.f32.gmra.mxu0 %v874
        %v995 = vpop.f32.mrf.mxu0
        %v996 = vadd.f32 0.0, %v995
        %997 = vmatmul.f32.gmra.mxu0 %v877
        %v998 = vpop.f32.mrf.mxu0
        %v999 = vadd.f32 0.0, %v998
        %1000 = vmatmul.f32.gmra.mxu0 %v880
        %v1001 = vpop.f32.mrf.mxu0
        %v1002 = vadd.f32 0.0, %v1001
        %1003 = vmatmul.f32.gmra.mxu0 %v883
        %v1004 = vpop.f32.mrf.mxu0
        %v1005 = vadd.f32 0.0, %v1004
        %1006 = vdwg.mxu0
        %v1007 = vadd.f32 %v645, %v906
        %v1008 = vadd.f32 %v648, %v909
        %v1009 = vadd.f32 %v651, %v912
        %v1010 = vadd.f32 %v654, %v915
        %v1011 = vadd.f32 %v657, %v918
        %v1012 = vadd.f32 %v660, %v921
        %v1013 = vadd.f32 %v663, %v924
        %v1014 = vadd.f32 %v666, %v927
        %v1015 = vadd.f32 %v669, %v930
        %v1016 = vadd.f32 %v672, %v933
        %v1017 = vadd.f32 %v675, %v936
        %v1018 = vadd.f32 %v678, %v939
        %v1019 = vadd.f32 %v681, %v942
        %v1020 = vadd.f32 %v684, %v945
        %v1021 = vadd.f32 %v687, %v948
        %v1022 = vadd.f32 %v690, %v951
        %v1023 = vadd.f32 %v693, %v954
        %v1024 = vadd.f32 %v696, %v957
        %v1025 = vadd.f32 %v699, %v960
        %v1026 = vadd.f32 %v702, %v963
        %v1027 = vadd.f32 %v705, %v966
        %v1028 = vadd.f32 %v708, %v969
        %v1029 = vadd.f32 %v711, %v972
        %v1030 = vadd.f32 %v714, %v975
        %v1031 = vadd.f32 %v717, %v978
        %v1032 = vadd.f32 %v720, %v981
        %v1033 = vadd.f32 %v723, %v984
        %v1034 = vadd.f32 %v726, %v987
        %v1035 = vadd.f32 %v729, %v990
        %v1036 = vadd.f32 %v732, %v993
        %v1037 = vadd.f32 %v735, %v996
        %v1038 = vadd.f32 %v738, %v999
        %v1039 = vadd.f32 %v741, %v1002
        %v1040 = vadd.f32 %v744, %v1005
        %v1041 = vld [vmem:[%s222 + $0x12] sm:$0xff]
        %v1042 = vld [vmem:[%s222 + $0x1a] sm:$0xff]
        %v1043 = vld [vmem:[%s222 + $0x22] sm:$0xff]
        %v1044 = vld [vmem:[%s222 + $0x2a] sm:$0xff]
        %v1045 = vld [vmem:[%s222 + $0x32] sm:$0xff]
        %v1046 = vld [vmem:[%s222 + $0x3a] sm:$0xff]
        %v1047 = vld [vmem:[%s222 + $0x42] sm:$0xff]
        %v1048 = vld [vmem:[%s222 + $0x4a] sm:$0xff]
        %v1049 = vld [vmem:[%s222 + $0x52] sm:$0xff]
        %v1050 = vld [vmem:[%s222 + $0x5a] sm:$0xff]
        %v1051 = vld [vmem:[%s222 + $0x62] sm:$0xff]
        %v1052 = vld [vmem:[%s222 + $0x6a] sm:$0xff]
        %v1053 = vld [vmem:[%s222 + $0x72] sm:$0xff]
        %v1054 = vld [vmem:[%s222 + $0x7a] sm:$0xff]
        %v1055 = vld [vmem:[%s222 + $0x82] sm:$0xff]
        %v1056 = vld [vmem:[%s222 + $0x8a] sm:$0xff]
        %v1057 = vld [vmem:[%s222 + $0x92] sm:$0xff]
        %v1058 = vld [vmem:[%s222 + $0x9a] sm:$0xff]
        %v1059 = vld [vmem:[%s222 + $0xa2] sm:$0xff]
        %v1060 = vld [vmem:[%s222 + $0xaa] sm:$0xff]
        %v1061 = vld [vmem:[%s222 + $0xb2] sm:$0xff]
        %v1062 = vld [vmem:[%s222 + $0xba] sm:$0xff]
        %v1063 = vld [vmem:[%s222 + $0xc2] sm:$0xff]
        %v1064 = vld [vmem:[%s222 + $0xca] sm:$0xff]
        %v1065 = vld [vmem:[%s222 + $0xd2] sm:$0xff]
        %v1066 = vld [vmem:[%s222 + $0xda] sm:$0xff]
        %v1067 = vld [vmem:[%s222 + $0xe2] sm:$0xff]
        %v1068 = vld [vmem:[%s222 + $0xea] sm:$0xff]
        %v1069 = vld [vmem:[%s222 + $0xf2] sm:$0xff]
        %v1070 = vld [vmem:[%s222 + $0xfa] sm:$0xff]
        %v1071 = vld [vmem:[%s222 + $0x102] sm:$0xff]
        %v1072 = vld [vmem:[%s222 + $0x10a] sm:$0xff]
        %v1073 = vld [vmem:[%s222 + $0x112] sm:$0xff]
        %v1074 = vld [vmem:[%s222 + $0x11a] sm:$0xff]
        %s1075 = scalar_lea.vmem %s1, 48
        %v1076 = vld [vmem:[%s1075] sm:$0xff]
        %v1077 = vld [vmem:[%s1075 + $0x8] sm:$0xf]
        %v1079 = vsel %vm296, %v1041, 0
        %v1082 = vsel %vm296, %v1042, 0
        %v1085 = vsel %vm296, %v1043, 0
        %v1088 = vsel %vm296, %v1044, 0
        %v1091 = vsel %vm296, %v1045, 0
        %v1094 = vsel %vm296, %v1046, 0
        %v1097 = vsel %vm296, %v1047, 0
        %v1100 = vsel %vm296, %v1048, 0
        %v1103 = vsel %vm296, %v1049, 0
        %v1106 = vsel %vm296, %v1050, 0
        %v1109 = vsel %vm296, %v1051, 0
        %v1112 = vsel %vm296, %v1052, 0
        %v1115 = vsel %vm296, %v1053, 0
        %v1118 = vsel %vm296, %v1054, 0
        %v1121 = vsel %vm296, %v1055, 0
        %v1124 = vsel %vm296, %v1056, 0
        %v1127 = vsel %vm296, %v1057, 0
        %v1130 = vsel %vm296, %v1058, 0
        %v1133 = vsel %vm296, %v1059, 0
        %v1136 = vsel %vm296, %v1060, 0
        %v1139 = vsel %vm296, %v1061, 0
        %v1142 = vsel %vm296, %v1062, 0
        %v1145 = vsel %vm296, %v1063, 0
        %v1148 = vsel %vm296, %v1064, 0
        %v1151 = vsel %vm296, %v1065, 0
        %v1154 = vsel %vm296, %v1066, 0
        %v1157 = vsel %vm296, %v1067, 0
        %v1160 = vsel %vm296, %v1068, 0
        %v1163 = vsel %vm296, %v1069, 0
        %v1166 = vsel %vm296, %v1070, 0
        %v1169 = vsel %vm296, %v1071, 0
        %v1172 = vsel %vm296, %v1072, 0
        %v1175 = vsel %vm296, %v1073, 0
        %v1178 = vsel %vm296, %v1074, 0
        %v1181 = vsel %vm399, %v1077, 0
        %1183 = vmatpush.msra.mxu0 0.0
        %1184 = vmatpush.msra.mxu0 0.0
        %1185 = vmatpush.msra.mxu0 0.0
        %1186 = vmatpush.msra.mxu0 0.0
        %1187 = vmatpush.msra.mxu0 0.0
        %1188 = vmatpush.msra.mxu0 0.0
        %1189 = vmatpush.msra.mxu0 0.0
        %1190 = vmatpush.msra.mxu0 0.0
        %1191 = vmatpush.msra.mxu0 0.0
        %1192 = vmatpush.msra.mxu0 0.0
        %1193 = vmatpush.msra.mxu0 0.0
        %1194 = vmatpush.msra.mxu0 0.0
        %1195 = vmatpush.msra.mxu0 0.0
        %1196 = vmatpush.msra.mxu0 0.0
        %1197 = vmatpush.msra.mxu0 %v1181
        %1198 = vmatpush.msra.mxu0 %v1076
        %1199 = vmatmul.f32.gmra.mxu0 %v1079
        %v1200 = vpop.f32.mrf.mxu0
        %v1201 = vadd.f32 0.0, %v1200
        %1202 = vmatmul.f32.gmra.mxu0 %v1082
        %v1203 = vpop.f32.mrf.mxu0
        %v1204 = vadd.f32 0.0, %v1203
        %1205 = vmatmul.f32.gmra.mxu0 %v1085
        %v1206 = vpop.f32.mrf.mxu0
        %v1207 = vadd.f32 0.0, %v1206
        %1208 = vmatmul.f32.gmra.mxu0 %v1088
        %v1209 = vpop.f32.mrf.mxu0
        %v1210 = vadd.f32 0.0, %v1209
        %1211 = vmatmul.f32.gmra.mxu0 %v1091
        %v1212 = vpop.f32.mrf.mxu0
        %v1213 = vadd.f32 0.0, %v1212
        %1214 = vmatmul.f32.gmra.mxu0 %v1094
        %v1215 = vpop.f32.mrf.mxu0
        %v1216 = vadd.f32 0.0, %v1215
        %1217 = vmatmul.f32.gmra.mxu0 %v1097
        %v1218 = vpop.f32.mrf.mxu0
        %v1219 = vadd.f32 0.0, %v1218
        %1220 = vmatmul.f32.gmra.mxu0 %v1100
        %v1221 = vpop.f32.mrf.mxu0
        %v1222 = vadd.f32 0.0, %v1221
        %1223 = vmatmul.f32.gmra.mxu0 %v1103
        %v1224 = vpop.f32.mrf.mxu0
        %v1225 = vadd.f32 0.0, %v1224
        %1226 = vmatmul.f32.gmra.mxu0 %v1106
        %v1227 = vpop.f32.mrf.mxu0
        %v1228 = vadd.f32 0.0, %v1227
        %1229 = vmatmul.f32.gmra.mxu0 %v1109
        %v1230 = vpop.f32.mrf.mxu0
        %v1231 = vadd.f32 0.0, %v1230
        %1232 = vmatmul.f32.gmra.mxu0 %v1112
        %v1233 = vpop.f32.mrf.mxu0
        %v1234 = vadd.f32 0.0, %v1233
        %1235 = vmatmul.f32.gmra.mxu0 %v1115
        %v1236 = vpop.f32.mrf.mxu0
        %v1237 = vadd.f32 0.0, %v1236
        %1238 = vmatmul.f32.gmra.mxu0 %v1118
        %v1239 = vpop.f32.mrf.mxu0
        %v1240 = vadd.f32 0.0, %v1239
        %1241 = vmatmul.f32.gmra.mxu0 %v1121
        %v1242 = vpop.f32.mrf.mxu0
        %v1243 = vadd.f32 0.0, %v1242
        %1244 = vmatmul.f32.gmra.mxu0 %v1124
        %v1245 = vpop.f32.mrf.mxu0
        %v1246 = vadd.f32 0.0, %v1245
        %1247 = vmatmul.f32.gmra.mxu0 %v1127
        %v1248 = vpop.f32.mrf.mxu0
        %v1249 = vadd.f32 0.0, %v1248
        %1250 = vmatmul.f32.gmra.mxu0 %v1130
        %v1251 = vpop.f32.mrf.mxu0
        %v1252 = vadd.f32 0.0, %v1251
        %1253 = vmatmul.f32.gmra.mxu0 %v1133
        %v1254 = vpop.f32.mrf.mxu0
        %v1255 = vadd.f32 0.0, %v1254
        %1256 = vmatmul.f32.gmra.mxu0 %v1136
        %v1257 = vpop.f32.mrf.mxu0
        %v1258 = vadd.f32 0.0, %v1257
        %1259 = vmatmul.f32.gmra.mxu0 %v1139
        %v1260 = vpop.f32.mrf.mxu0
        %v1261 = vadd.f32 0.0, %v1260
        %1262 = vmatmul.f32.gmra.mxu0 %v1142
        %v1263 = vpop.f32.mrf.mxu0
        %v1264 = vadd.f32 0.0, %v1263
        %1265 = vmatmul.f32.gmra.mxu0 %v1145
        %v1266 = vpop.f32.mrf.mxu0
        %v1267 = vadd.f32 0.0, %v1266
        %1268 = vmatmul.f32.gmra.mxu0 %v1148
        %v1269 = vpop.f32.mrf.mxu0
        %v1270 = vadd.f32 0.0, %v1269
        %1271 = vmatmul.f32.gmra.mxu0 %v1151
        %v1272 = vpop.f32.mrf.mxu0
        %v1273 = vadd.f32 0.0, %v1272
        %1274 = vmatmul.f32.gmra.mxu0 %v1154
        %v1275 = vpop.f32.mrf.mxu0
        %v1276 = vadd.f32 0.0, %v1275
        %1277 = vmatmul.f32.gmra.mxu0 %v1157
        %v1278 = vpop.f32.mrf.mxu0
        %v1279 = vadd.f32 0.0, %v1278
        %1280 = vmatmul.f32.gmra.mxu0 %v1160
        %v1281 = vpop.f32.mrf.mxu0
        %v1282 = vadd.f32 0.0, %v1281
        %1283 = vmatmul.f32.gmra.mxu0 %v1163
        %v1284 = vpop.f32.mrf.mxu0
        %v1285 = vadd.f32 0.0, %v1284
        %1286 = vmatmul.f32.gmra.mxu0 %v1166
        %v1287 = vpop.f32.mrf.mxu0
        %v1288 = vadd.f32 0.0, %v1287
        %1289 = vmatmul.f32.gmra.mxu0 %v1169
        %v1290 = vpop.f32.mrf.mxu0
        %v1291 = vadd.f32 0.0, %v1290
        %1292 = vmatmul.f32.gmra.mxu0 %v1172
        %v1293 = vpop.f32.mrf.mxu0
        %v1294 = vadd.f32 0.0, %v1293
        %1295 = vmatmul.f32.gmra.mxu0 %v1175
        %v1296 = vpop.f32.mrf.mxu0
        %v1297 = vadd.f32 0.0, %v1296
        %1298 = vmatmul.f32.gmra.mxu0 %v1178
        %v1299 = vpop.f32.mrf.mxu0
        %v1300 = vadd.f32 0.0, %v1299
        %1301 = vdwg.mxu0
        %v1302 = vadd.f32 %v1007, %v1201
        %v1303 = vadd.f32 %v1008, %v1204
        %v1304 = vadd.f32 %v1009, %v1207
        %v1305 = vadd.f32 %v1010, %v1210
        %v1306 = vadd.f32 %v1011, %v1213
        %v1307 = vadd.f32 %v1012, %v1216
        %v1308 = vadd.f32 %v1013, %v1219
        %v1309 = vadd.f32 %v1014, %v1222
        %v1310 = vadd.f32 %v1015, %v1225
        %v1311 = vadd.f32 %v1016, %v1228
        %v1312 = vadd.f32 %v1017, %v1231
        %v1313 = vadd.f32 %v1018, %v1234
        %v1314 = vadd.f32 %v1019, %v1237
        %v1315 = vadd.f32 %v1020, %v1240
        %v1316 = vadd.f32 %v1021, %v1243
        %v1317 = vadd.f32 %v1022, %v1246
        %v1318 = vadd.f32 %v1023, %v1249
        %v1319 = vadd.f32 %v1024, %v1252
        %v1320 = vadd.f32 %v1025, %v1255
        %v1321 = vadd.f32 %v1026, %v1258
        %v1322 = vadd.f32 %v1027, %v1261
        %v1323 = vadd.f32 %v1028, %v1264
        %v1324 = vadd.f32 %v1029, %v1267
        %v1325 = vadd.f32 %v1030, %v1270
        %v1326 = vadd.f32 %v1031, %v1273
        %v1327 = vadd.f32 %v1032, %v1276
        %v1328 = vadd.f32 %v1033, %v1279
        %v1329 = vadd.f32 %v1034, %v1282
        %v1330 = vadd.f32 %v1035, %v1285
        %v1331 = vadd.f32 %v1036, %v1288
        %v1332 = vadd.f32 %v1037, %v1291
        %v1333 = vadd.f32 %v1038, %v1294
        %v1334 = vadd.f32 %v1039, %v1297
        %v1335 = vadd.f32 %v1040, %v1300
        %v1336 = vld [vmem:[%s2] sm:$0x1]
        %v1338 = vperm.slane %v1336, 0
        %v1340 = vadd.f32 %v1302, %v1338
        %v1341 = vadd.f32 %v1303, %v1338
        %v1342 = vadd.f32 %v1304, %v1338
        %v1343 = vadd.f32 %v1305, %v1338
        %v1344 = vadd.f32 %v1306, %v1338
        %v1345 = vadd.f32 %v1307, %v1338
        %v1346 = vadd.f32 %v1308, %v1338
        %v1347 = vadd.f32 %v1309, %v1338
        %v1348 = vadd.f32 %v1310, %v1338
        %v1349 = vadd.f32 %v1311, %v1338
        %v1350 = vadd.f32 %v1312, %v1338
        %v1351 = vadd.f32 %v1313, %v1338
        %v1352 = vadd.f32 %v1314, %v1338
        %v1353 = vadd.f32 %v1315, %v1338
        %v1354 = vadd.f32 %v1316, %v1338
        %v1355 = vadd.f32 %v1317, %v1338
        %v1356 = vadd.f32 %v1318, %v1338
        %v1357 = vadd.f32 %v1319, %v1338
        %v1358 = vadd.f32 %v1320, %v1338
        %v1359 = vadd.f32 %v1321, %v1338
        %v1360 = vadd.f32 %v1322, %v1338
        %v1361 = vadd.f32 %v1323, %v1338
        %v1362 = vadd.f32 %v1324, %v1338
        %v1363 = vadd.f32 %v1325, %v1338
        %v1364 = vadd.f32 %v1326, %v1338
        %v1365 = vadd.f32 %v1327, %v1338
        %v1366 = vadd.f32 %v1328, %v1338
        %v1367 = vadd.f32 %v1329, %v1338
        %v1368 = vadd.f32 %v1330, %v1338
        %v1369 = vadd.f32 %v1331, %v1338
        %v1370 = vadd.f32 %v1332, %v1338
        %v1371 = vadd.f32 %v1333, %v1338
        %v1372 = vadd.f32 %v1334, %v1338
        %v1373 = vadd.f32 %v1335, %v1338
        %v1374 = vmax.f32 %v1340, 0.0
        %v1375 = vmax.f32 %v1341, 0.0
        %v1376 = vmax.f32 %v1342, 0.0
        %v1377 = vmax.f32 %v1343, 0.0
        %v1378 = vmax.f32 %v1344, 0.0
        %v1379 = vmax.f32 %v1345, 0.0
        %v1380 = vmax.f32 %v1346, 0.0
        %v1381 = vmax.f32 %v1347, 0.0
        %v1382 = vmax.f32 %v1348, 0.0
        %v1383 = vmax.f32 %v1349, 0.0
        %v1384 = vmax.f32 %v1350, 0.0
        %v1385 = vmax.f32 %v1351, 0.0
        %v1386 = vmax.f32 %v1352, 0.0
        %v1387 = vmax.f32 %v1353, 0.0
        %v1388 = vmax.f32 %v1354, 0.0
        %v1389 = vmax.f32 %v1355, 0.0
        %v1390 = vmax.f32 %v1356, 0.0
        %v1391 = vmax.f32 %v1357, 0.0
        %v1392 = vmax.f32 %v1358, 0.0
        %v1393 = vmax.f32 %v1359, 0.0
        %v1394 = vmax.f32 %v1360, 0.0
        %v1395 = vmax.f32 %v1361, 0.0
        %v1396 = vmax.f32 %v1362, 0.0
        %v1397 = vmax.f32 %v1363, 0.0
        %v1398 = vmax.f32 %v1364, 0.0
        %v1399 = vmax.f32 %v1365, 0.0
        %v1400 = vmax.f32 %v1366, 0.0
        %v1401 = vmax.f32 %v1367, 0.0
        %v1402 = vmax.f32 %v1368, 0.0
        %v1403 = vmax.f32 %v1369, 0.0
        %v1404 = vmax.f32 %v1370, 0.0
        %v1405 = vmax.f32 %v1371, 0.0
        %v1406 = vmax.f32 %v1372, 0.0
        %v1407 = vmax.f32 %v1373, 0.0
        %v1408 = vpack.c.bf16 %v1375, %v1374
        %v1409 = vpack.c.bf16 %v1377, %v1376
        %v1410 = vpack.c.bf16 %v1379, %v1378
        %v1411 = vpack.c.bf16 %v1381, %v1380
        %v1412 = vpack.c.bf16 %v1383, %v1382
        %v1413 = vpack.c.bf16 %v1385, %v1384
        %v1414 = vpack.c.bf16 %v1387, %v1386
        %v1415 = vpack.c.bf16 %v1389, %v1388
        %v1416 = vpack.c.bf16 %v1391, %v1390
        %v1417 = vpack.c.bf16 %v1393, %v1392
        %v1418 = vpack.c.bf16 %v1395, %v1394
        %v1419 = vpack.c.bf16 %v1397, %v1396
        %v1420 = vpack.c.bf16 %v1399, %v1398
        %v1421 = vpack.c.bf16 %v1401, %v1400
        %v1422 = vpack.c.bf16 %v1403, %v1402
        %v1423 = vpack.c.bf16 %v1405, %v1404
        %v1424 = vpack.c.bf16 %v1407, %v1406
        %v1425 = vld [vmem:[%s3] sm:$0xf]
        %v1426 = vld [vmem:[%s3 + $0x4] sm:$0xf]
        %v1427 = vld [vmem:[%s3 + $0x8] sm:$0xf]
        %v1428 = vld [vmem:[%s3 + $0xc] sm:$0xf]
        %v1429 = vld [vmem:[%s3 + $0x10] sm:$0xf]
        %v1430 = vld [vmem:[%s3 + $0x14] sm:$0xf]
        %v1431 = vld [vmem:[%s3 + $0x18] sm:$0xf]
        %v1432 = vld [vmem:[%s3 + $0x1c] sm:$0xf]
        %v1433 = vld [vmem:[%s3 + $0x20] sm:$0xf]
        %v1434 = vld [vmem:[%s3 + $0x24] sm:$0xf]
        %v1435 = vld [vmem:[%s3 + $0x28] sm:$0xf]
        %v1436 = vld [vmem:[%s3 + $0x2c] sm:$0xf]
        %v1437 = vld [vmem:[%s3 + $0x30] sm:$0xf]
        %v1438 = vld [vmem:[%s3 + $0x34] sm:$0xf]
        %v1439 = vld [vmem:[%s3 + $0x38] sm:$0xf]
        %v1440 = vld [vmem:[%s3 + $0x3c] sm:$0xf]
        %v1441 = vld [vmem:[%s4] sm:$0x1]
        %v1443 = vperm.slane %v1441, 0
        %v1461 = vunpack.c.l.b16 %v1425
        %v1462 = vunpack.c.l.b16 %v1426
        %v1463 = vunpack.c.l.b16 %v1427
        %v1464 = vunpack.c.l.b16 %v1428
        %v1465 = vunpack.c.l.b16 %v1429
        %v1466 = vunpack.c.l.b16 %v1430
        %v1467 = vunpack.c.l.b16 %v1431
        %v1468 = vunpack.c.l.b16 %v1432
        %v1469 = vunpack.c.l.b16 %v1433
        %v1470 = vunpack.c.l.b16 %v1434
        %v1471 = vunpack.c.l.b16 %v1435
        %v1472 = vunpack.c.l.b16 %v1436
        %v1473 = vunpack.c.l.b16 %v1437
        %v1474 = vunpack.c.l.b16 %v1438
        %v1475 = vunpack.c.l.b16 %v1439
        %v1476 = vunpack.c.l.b16 %v1440
        %v1477 = vpack.c.b16 %v1462, %v1461
        %v1478 = vpack.c.b16 %v1464, %v1463
        %v1479 = vpack.c.b16 %v1466, %v1465
        %v1480 = vpack.c.b16 %v1468, %v1467
        %v1481 = vpack.c.b16 %v1470, %v1469
        %v1482 = vpack.c.b16 %v1472, %v1471
        %v1483 = vpack.c.b16 %v1474, %v1473
        %v1484 = vpack.c.b16 %v1476, %v1475
        %1493 = vmatpush.bf16.msra.mxu0 %v1484
        %1494 = vmatpush.bf16.msra.mxu0 %v1483
        %1495 = vmatpush.bf16.msra.mxu0 %v1482
        %1496 = vmatpush.bf16.msra.mxu0 %v1481
        %1497 = vmatpush.bf16.msra.mxu0 %v1480
        %1498 = vmatpush.bf16.msra.mxu0 %v1479
        %1499 = vmatpush.bf16.msra.mxu0 %v1478
        %1500 = vmatpush.bf16.msra.mxu0 %v1477
        %1501 = vmatmul.bf16.gmra.mxu0 %v1408
        %v1502 = vpop.f32.mrf.mxu0
        %v1503 = vadd.f32 %v1443, %v1502
        %v1504 = vpop.f32.mrf.mxu0
        %v1505 = vadd.f32 %v1443, %v1504
        %1506 = vmatmul.bf16.gmra.mxu0 %v1409
        %v1507 = vpop.f32.mrf.mxu0
        %v1508 = vadd.f32 %v1443, %v1507
        %v1509 = vpop.f32.mrf.mxu0
        %v1510 = vadd.f32 %v1443, %v1509
        %1511 = vmatmul.bf16.gmra.mxu0 %v1410
        %v1512 = vpop.f32.mrf.mxu0
        %v1513 = vadd.f32 %v1443, %v1512
        %v1514 = vpop.f32.mrf.mxu0
        %v1515 = vadd.f32 %v1443, %v1514
        %1516 = vmatmul.bf16.gmra.mxu0 %v1411
        %v1517 = vpop.f32.mrf.mxu0
        %v1518 = vadd.f32 %v1443, %v1517
        %v1519 = vpop.f32.mrf.mxu0
        %v1520 = vadd.f32 %v1443, %v1519
        %1521 = vmatmul.bf16.gmra.mxu0 %v1412
        %v1522 = vpop.f32.mrf.mxu0
        %v1523 = vadd.f32 %v1443, %v1522
        %v1524 = vpop.f32.mrf.mxu0
        %v1525 = vadd.f32 %v1443, %v1524
        %1526 = vmatmul.bf16.gmra.mxu0 %v1413
        %v1527 = vpop.f32.mrf.mxu0
        %v1528 = vadd.f32 %v1443, %v1527
        %v1529 = vpop.f32.mrf.mxu0
        %v1530 = vadd.f32 %v1443, %v1529
        %1531 = vmatmul.bf16.gmra.mxu0 %v1414
        %v1532 = vpop.f32.mrf.mxu0
        %v1533 = vadd.f32 %v1443, %v1532
        %v1534 = vpop.f32.mrf.mxu0
        %v1535 = vadd.f32 %v1443, %v1534
        %1536 = vmatmul.bf16.gmra.mxu0 %v1415
        %v1537 = vpop.f32.mrf.mxu0
        %v1538 = vadd.f32 %v1443, %v1537
        %v1539 = vpop.f32.mrf.mxu0
        %v1540 = vadd.f32 %v1443, %v1539
        %1541 = vmatmul.bf16.gmra.mxu0 %v1416
        %v1542 = vpop.f32.mrf.mxu0
        %v1543 = vadd.f32 %v1443, %v1542
        %v1544 = vpop.f32.mrf.mxu0
        %v1545 = vadd.f32 %v1443, %v1544
        %1546 = vmatmul.bf16.gmra.mxu0 %v1417
        %v1547 = vpop.f32.mrf.mxu0
        %v1548 = vadd.f32 %v1443, %v1547
        %v1549 = vpop.f32.mrf.mxu0
        %v1550 = vadd.f32 %v1443, %v1549
        %1551 = vmatmul.bf16.gmra.mxu0 %v1418
        %v1552 = vpop.f32.mrf.mxu0
        %v1553 = vadd.f32 %v1443, %v1552
        %v1554 = vpop.f32.mrf.mxu0
        %v1555 = vadd.f32 %v1443, %v1554
        %1556 = vmatmul.bf16.gmra.mxu0 %v1419
        %v1557 = vpop.f32.mrf.mxu0
        %v1558 = vadd.f32 %v1443, %v1557
        %v1559 = vpop.f32.mrf.mxu0
        %v1560 = vadd.f32 %v1443, %v1559
        %1561 = vmatmul.bf16.gmra.mxu0 %v1420
        %v1562 = vpop.f32.mrf.mxu0
        %v1563 = vadd.f32 %v1443, %v1562
        %v1564 = vpop.f32.mrf.mxu0
        %v1565 = vadd.f32 %v1443, %v1564
        %1566 = vmatmul.bf16.gmra.mxu0 %v1421
        %v1567 = vpop.f32.mrf.mxu0
        %v1568 = vadd.f32 %v1443, %v1567
        %v1569 = vpop.f32.mrf.mxu0
        %v1570 = vadd.f32 %v1443, %v1569
        %1571 = vmatmul.bf16.gmra.mxu0 %v1422
        %v1572 = vpop.f32.mrf.mxu0
        %v1573 = vadd.f32 %v1443, %v1572
        %v1574 = vpop.f32.mrf.mxu0
        %v1575 = vadd.f32 %v1443, %v1574
        %1576 = vmatmul.bf16.gmra.mxu0 %v1423
        %v1577 = vpop.f32.mrf.mxu0
        %v1578 = vadd.f32 %v1443, %v1577
        %v1579 = vpop.f32.mrf.mxu0
        %v1580 = vadd.f32 %v1443, %v1579
        %1581 = vmatmul.bf16.gmra.mxu0 %v1424
        %v1582 = vpop.f32.mrf.mxu0
        %v1583 = vadd.f32 %v1443, %v1582
        %v1584 = vpop.f32.mrf.mxu0
        %v1585 = vadd.f32 %v1443, %v1584
        %1586 = vdwg.mxu0
        %v1587 = vpack.c.bf16 %v1503, %v1503
        %v1588 = vpack.c.bf16 %v1505, %v1505
        %1589 = vst [vmem:[%s217] sm:$0xf] %v1587
        %1590 = vst [vmem:[%s217 + $0x4] sm:$0xf] %v1588
        %v1591 = vpack.c.bf16 %v1508, %v1508
        %v1592 = vpack.c.bf16 %v1510, %v1510
        %v1593 = vpack.c.bf16 %v1513, %v1513
        %vm1594 = vsmask.f32 3328
        %vm1595 = vsmask.f32 7440
        %vm1596 = vmor %vm1594, %vm1595
        %v1598 = vshrl.u32 %v1591, 16
        %v1600 = vrot.slane %v1598, 4
        %v1601 = vshll.u32 %v1591, 16
        %v1603 = vrot.slane %v1601, 5
        %v1604 = vor.u32 %v1600, %v1603
        %v1605 = vrot.slane %v1604, 4
        %v1607 = vshll.u32 %v1592, 16
        %v1609 = vrot.slane %v1607, 5
        %v1610 = vsel %vm1596, %v1605, %v1609
        %v1611 = vshrl.u32 %v1592, 16
        %v1613 = vrot.slane %v1611, 4
        %v1614 = vor.u32 %v1613, %v1609
        %v1615 = vrot.slane %v1614, 4
        %v1617 = vshll.u32 %v1593, 16
        %v1619 = vrot.slane %v1617, 5
        %v1620 = vsel %vm1596, %v1615, %v1619
        %s1623 = scalar_lea.vmem %s217, 8 [#allocation2]
        %1624 = vst [vmem:[%s1623] sm:$0xf] %v1610
        %1625 = vst [vmem:[%s1623 + $0x4] sm:$0xf] %v1620
        %v1626 = vpack.c.bf16 %v1515, %v1515
        %v1627 = vpack.c.bf16 %v1518, %v1518
        %vm1631 = vcmask 1042432
        %vm1632 = vcmask 1046532
        %vm1633 = vmor %vm1631, %vm1632
        %v1634 = vrot.slane %v1593, 5
        %v1635 = vrot.slane %v1634, 4
        %v1636 = vrot.slane %v1626, 5
        %v1637 = vsel %vm1633, %v1635, %v1636
        %v1638 = vrot.slane %v1636, 4
        %v1639 = vrot.slane %v1627, 5
        %v1640 = vsel %vm1633, %v1638, %v1639
        %s1643 = scalar_lea.vmem %s217, 16 [#allocation2]
        %1644 = vst [vmem:[%s1643] sm:$0xf] %v1637
        %1645 = vst [vmem:[%s1643 + $0x4] sm:$0xf] %v1640
        %v1646 = vpack.c.bf16 %v1520, %v1520
        %v1647 = vpack.c.bf16 %v1523, %v1523
        %vm1648 = vsmask.f32 2304
        %vm1649 = vsmask.f32 6416
        %vm1650 = vmor %vm1648, %vm1649
        %v1652 = vshrl.u32 %v1627, 16
        %v1654 = vrot.slane %v1652, 5
        %v1655 = vshll.u32 %v1627, 16
        %v1657 = vrot.slane %v1655, 6
        %v1658 = vor.u32 %v1654, %v1657
        %v1659 = vrot.slane %v1658, 4
        %v1661 = vshrl.u32 %v1646, 16
        %v1663 = vrot.slane %v1661, 5
        %v1664 = vshll.u32 %v1646, 16
        %v1666 = vrot.slane %v1664, 6
        %v1667 = vor.u32 %v1663, %v1666
        %v1668 = vsel %vm1650, %v1659, %v1667
        %v1669 = vrot.slane %v1667, 4
        %v1671 = vshrl.u32 %v1647, 16
        %v1673 = vrot.slane %v1671, 5
        %v1674 = vshll.u32 %v1647, 16
        %v1676 = vrot.slane %v1674, 6
        %v1677 = vor.u32 %v1673, %v1676
        %v1678 = vsel %vm1650, %v1669, %v1677
        %s1681 = scalar_lea.vmem %s217, 24 [#allocation2]
        %1682 = vst [vmem:[%s1681] sm:$0xf] %v1668
        %1683 = vst [vmem:[%s1681 + $0x4] sm:$0xf] %v1678
        %v1684 = vpack.c.bf16 %v1525, %v1525
        %v1685 = vpack.c.bf16 %v1528, %v1528
        %vm1689 = vcmask 1041408
        %vm1690 = vcmask 1045508
        %vm1691 = vmor %vm1689, %vm1690
        %v1692 = vrot.slane %v1647, 6
        %v1693 = vrot.slane %v1692, 4
        %v1694 = vrot.slane %v1684, 6
        %v1695 = vsel %vm1691, %v1693, %v1694
        %v1696 = vrot.slane %v1694, 4
        %v1697 = vrot.slane %v1685, 6
        %v1698 = vsel %vm1691, %v1696, %v1697
        %s1701 = scalar_lea.vmem %s217, 32 [#allocation2]
        %1702 = vst [vmem:[%s1701] sm:$0xf] %v1695
        %1703 = vst [vmem:[%s1701 + $0x4] sm:$0xf] %v1698
        %v1704 = vpack.c.bf16 %v1530, %v1530
        %v1705 = vpack.c.bf16 %v1533, %v1533
        %vm1706 = vsmask.f32 1280
        %vm1707 = vsmask.f32 5392
        %vm1708 = vmor %vm1706, %vm1707
        %v1710 = vshrl.u32 %v1685, 16
        %v1712 = vrot.slane %v1710, 6
        %v1713 = vshll.u32 %v1685, 16
        %v1715 = vrot.slane %v1713, 7
        %v1716 = vor.u32 %v1712, %v1715
        %v1717 = vrot.slane %v1716, 4
        %v1719 = vshrl.u32 %v1704, 16
        %v1721 = vrot.slane %v1719, 6
        %v1722 = vshll.u32 %v1704, 16
        %v1724 = vrot.slane %v1722, 7
        %v1725 = vor.u32 %v1721, %v1724
        %v1726 = vsel %vm1708, %v1717, %v1725
        %v1727 = vrot.slane %v1725, 4
        %v1729 = vshrl.u32 %v1705, 16
        %v1731 = vrot.slane %v1729, 6
        %v1732 = vshll.u32 %v1705, 16
        %v1734 = vrot.slane %v1732, 7
        %v1735 = vor.u32 %v1731, %v1734
        %v1736 = vsel %vm1708, %v1727, %v1735
        %s1739 = scalar_lea.vmem %s217, 40 [#allocation2]
        %1740 = vst [vmem:[%s1739] sm:$0xf] %v1726
        %1741 = vst [vmem:[%s1739 + $0x4] sm:$0xf] %v1736
        %v1742 = vpack.c.bf16 %v1535, %v1535
        %v1743 = vpack.c.bf16 %v1538, %v1538
        %vm1747 = vcmask 1040384
        %vm1748 = vcmask 1044484
        %vm1749 = vmor %vm1747, %vm1748
        %v1750 = vrot.slane %v1705, 7
        %v1751 = vrot.slane %v1750, 4
        %v1752 = vrot.slane %v1742, 7
        %v1753 = vsel %vm1749, %v1751, %v1752
        %v1754 = vrot.slane %v1752, 4
        %v1755 = vrot.slane %v1743, 7
        %v1756 = vsel %vm1749, %v1754, %v1755
        %s1759 = scalar_lea.vmem %s217, 48 [#allocation2]
        %1760 = vst [vmem:[%s1759] sm:$0xf] %v1753
        %1761 = vst [vmem:[%s1759 + $0x4] sm:$0xf] %v1756
        %v1762 = vpack.c.bf16 %v1540, %v1540
        %v1763 = vpack.c.bf16 %v1543, %v1543
        %vm1764 = vsmask.f32 256
        %vm1765 = vsmask.f32 4368
        %vm1766 = vmor %vm1764, %vm1765
        %v1768 = vshrl.u32 %v1743, 16
        %v1770 = vrot.slane %v1768, 7
        %v1771 = vrot.slane %v1770, 4
        %v1773 = vshrl.u32 %v1762, 16
        %v1775 = vrot.slane %v1773, 7
        %v1776 = vshll.u32 %v1762, 16
        %v1778 = vor.u32 %v1775, %v1776
        %v1779 = vsel %vm1766, %v1771, %v1778
        %v1780 = vrot.slane %v1775, 4
        %v1782 = vshrl.u32 %v1763, 16
        %v1784 = vrot.slane %v1782, 7
        %v1785 = vshll.u32 %v1763, 16
        %v1787 = vor.u32 %v1784, %v1785
        %v1788 = vsel %vm1766, %v1780, %v1787
        %s1791 = scalar_lea.vmem %s217, 56 [#allocation2]
        %1792 = vst [vmem:[%s1791] sm:$0xf] %v1779
        %1793 = vst [vmem:[%s1791 + $0x4] sm:$0xf] %v1788
        %v1794 = vpack.c.bf16 %v1545, %v1545
        %v1795 = vpack.c.bf16 %v1548, %v1548
        %s1796 = scalar_lea.vmem %s217, 64 [#allocation2]
        %1797 = vst [vmem:[%s1796] sm:$0xf] %v1794
        %1798 = vst [vmem:[%s1796 + $0x4] sm:$0xf] %v1795
        %v1799 = vpack.c.bf16 %v1550, %v1550
        %v1800 = vpack.c.bf16 %v1553, %v1553
        %v1801 = vpack.c.bf16 %v1555, %v1555
        %v1803 = vshrl.u32 %v1799, 16
        %v1805 = vrot.slane %v1803, 4
        %v1806 = vshll.u32 %v1799, 16
        %v1808 = vrot.slane %v1806, 5
        %v1809 = vor.u32 %v1805, %v1808
        %v1810 = vrot.slane %v1809, 4
        %v1812 = vshll.u32 %v1800, 16
        %v1814 = vrot.slane %v1812, 5
        %v1815 = vsel %vm1596, %v1810, %v1814
        %v1816 = vshrl.u32 %v1800, 16
        %v1818 = vrot.slane %v1816, 4
        %v1819 = vor.u32 %v1818, %v1814
        %v1820 = vrot.slane %v1819, 4
        %v1822 = vshll.u32 %v1801, 16
        %v1824 = vrot.slane %v1822, 5
        %v1825 = vsel %vm1596, %v1820, %v1824
        %s1828 = scalar_lea.vmem %s217, 72 [#allocation2]
        %1829 = vst [vmem:[%s1828] sm:$0xf] %v1815
        %1830 = vst [vmem:[%s1828 + $0x4] sm:$0xf] %v1825
        %v1831 = vpack.c.bf16 %v1558, %v1558
        %v1832 = vpack.c.bf16 %v1560, %v1560
        %v1836 = vrot.slane %v1801, 5
        %v1837 = vrot.slane %v1836, 4
        %v1838 = vrot.slane %v1831, 5
        %v1839 = vsel %vm1633, %v1837, %v1838
        %v1840 = vrot.slane %v1838, 4
        %v1841 = vrot.slane %v1832, 5
        %v1842 = vsel %vm1633, %v1840, %v1841
        %s1845 = scalar_lea.vmem %s217, 80 [#allocation2]
        %1846 = vst [vmem:[%s1845] sm:$0xf] %v1839
        %1847 = vst [vmem:[%s1845 + $0x4] sm:$0xf] %v1842
        %v1848 = vpack.c.bf16 %v1563, %v1563
        %v1849 = vpack.c.bf16 %v1565, %v1565
        %v1851 = vshrl.u32 %v1832, 16
        %v1853 = vrot.slane %v1851, 5
        %v1854 = vshll.u32 %v1832, 16
        %v1856 = vrot.slane %v1854, 6
        %v1857 = vor.u32 %v1853, %v1856
        %v1858 = vrot.slane %v1857, 4
        %v1860 = vshrl.u32 %v1848, 16
        %v1862 = vrot.slane %v1860, 5
        %v1863 = vshll.u32 %v1848, 16
        %v1865 = vrot.slane %v1863, 6
        %v1866 = vor.u32 %v1862, %v1865
        %v1867 = vsel %vm1650, %v1858, %v1866
        %v1868 = vrot.slane %v1866, 4
        %v1870 = vshrl.u32 %v1849, 16
        %v1872 = vrot.slane %v1870, 5
        %v1873 = vshll.u32 %v1849, 16
        %v1875 = vrot.slane %v1873, 6
        %v1876 = vor.u32 %v1872, %v1875
        %v1877 = vsel %vm1650, %v1868, %v1876
        %s1880 = scalar_lea.vmem %s217, 88 [#allocation2]
        %1881 = vst [vmem:[%s1880] sm:$0xf] %v1867
        %1882 = vst [vmem:[%s1880 + $0x4] sm:$0xf] %v1877
        %v1883 = vpack.c.bf16 %v1568, %v1568
        %v1884 = vpack.c.bf16 %v1570, %v1570
        %v1888 = vrot.slane %v1849, 6
        %v1889 = vrot.slane %v1888, 4
        %v1890 = vrot.slane %v1883, 6
        %v1891 = vsel %vm1691, %v1889, %v1890
        %v1892 = vrot.slane %v1890, 4
        %v1893 = vrot.slane %v1884, 6
        %v1894 = vsel %vm1691, %v1892, %v1893
        %s1897 = scalar_lea.vmem %s217, 96 [#allocation2]
        %1898 = vst [vmem:[%s1897] sm:$0xf] %v1891
        %1899 = vst [vmem:[%s1897 + $0x4] sm:$0xf] %v1894
        %v1900 = vpack.c.bf16 %v1573, %v1573
        %v1901 = vpack.c.bf16 %v1575, %v1575
        %v1903 = vshrl.u32 %v1884, 16
        %v1905 = vrot.slane %v1903, 6
        %v1906 = vshll.u32 %v1884, 16
        %v1908 = vrot.slane %v1906, 7
        %v1909 = vor.u32 %v1905, %v1908
        %v1910 = vrot.slane %v1909, 4
        %v1912 = vshrl.u32 %v1900, 16
        %v1914 = vrot.slane %v1912, 6
        %v1915 = vshll.u32 %v1900, 16
        %v1917 = vrot.slane %v1915, 7
        %v1918 = vor.u32 %v1914, %v1917
        %v1919 = vsel %vm1708, %v1910, %v1918
        %v1920 = vrot.slane %v1918, 4
        %v1922 = vshrl.u32 %v1901, 16
        %v1924 = vrot.slane %v1922, 6
        %v1925 = vshll.u32 %v1901, 16
        %v1927 = vrot.slane %v1925, 7
        %v1928 = vor.u32 %v1924, %v1927
        %v1929 = vsel %vm1708, %v1920, %v1928
        %s1932 = scalar_lea.vmem %s217, 104 [#allocation2]
        %1933 = vst [vmem:[%s1932] sm:$0xf] %v1919
        %1934 = vst [vmem:[%s1932 + $0x4] sm:$0xf] %v1929
        %v1935 = vpack.c.bf16 %v1578, %v1578
        %v1936 = vpack.c.bf16 %v1580, %v1580
        %v1940 = vrot.slane %v1901, 7
        %v1941 = vrot.slane %v1940, 4
        %v1942 = vrot.slane %v1935, 7
        %v1943 = vsel %vm1749, %v1941, %v1942
        %v1944 = vrot.slane %v1942, 4
        %v1945 = vrot.slane %v1936, 7
        %v1946 = vsel %vm1749, %v1944, %v1945
        %s1949 = scalar_lea.vmem %s217, 112 [#allocation2]
        %1950 = vst [vmem:[%s1949] sm:$0xf] %v1943
        %1951 = vst [vmem:[%s1949 + $0x4] sm:$0xf] %v1946
        %v1952 = vpack.c.bf16 %v1583, %v1583
        %v1953 = vpack.c.bf16 %v1585, %v1585
        %v1955 = vshrl.u32 %v1936, 16
        %v1957 = vrot.slane %v1955, 7
        %v1958 = vrot.slane %v1957, 4
        %v1960 = vshrl.u32 %v1952, 16
        %v1962 = vrot.slane %v1960, 7
        %v1963 = vshll.u32 %v1952, 16
        %v1965 = vor.u32 %v1962, %v1963
        %v1966 = vsel %vm1766, %v1958, %v1965
        %v1967 = vrot.slane %v1962, 4
        %v1969 = vshrl.u32 %v1953, 16
        %v1971 = vrot.slane %v1969, 7
        %v1972 = vshll.u32 %v1953, 16
        %v1974 = vor.u32 %v1971, %v1972
        %v1975 = vsel %vm1766, %v1967, %v1974
        %s1978 = scalar_lea.vmem %s217, 120 [#allocation2]
        %1979 = vst [vmem:[%s1978] sm:$0xf] %v1966
        %1980 = vst [vmem:[%s1978 + $0x4] sm:$0xf] %v1975
        %s1981 = sand.u32 %s137, 1
        %s1982 = scalar_lea.sflag [#allocation3], %s1981
        %s1983 = sand.u32 %s137, 1
        %s1984 = smul.addr %s1983, 128
        %s1985 = scalar_lea.vmem [#allocation2], %s1984
        // Predicated region
        $region41: #{tpu_custom_call.1} parent=39 // pred_check
          %p1986 = pneg %p147
        $region42: #{tpu_custom_call.1} parent=39 // pred_check_branch
          %1988 = sbr.rel (%p1986) target = $region44
        $region43: #{tpu_custom_call.1} parent=39 // pred_region
          %1990 = vsyncadd %s1982, 0
          %s1991 = smul.addr %s19, 32
          %s1992 = smul.addr %s1991, 4
          %s1993 = scalar_lea.hbm %s5, %s1992
          %s1994 = sshll.u32 %s1985, 4
          %s1995 = int_to_ptr.vmem [resolvable:$true] %s1994
          %s1996 = sshll.u32 %s1993, 4
          %s1997 = int_to_ptr.hbm [resolvable:$true] %s1996
          %2002 = dma.vmem_to_hbm [thread:$0]  %s1995, 2048, %s1997, %s1982, 64, 64, 4
        $region44: #{tpu_custom_call.1} parent=39 // pred_fallthru
          _
      $region40: #{tpu_custom_call.1} parent=5 // pred_fallthru
        _
      %p2003 = scmp.le.s32.totalorder 2, %s14
      // Predicated region
      $region45: #{tpu_custom_call.1} parent=5 // pred_check
        %p2004 = pneg %p2003
      $region46: #{tpu_custom_call.1} parent=5 // pred_check_branch
        %2006 = sbr.rel (%p2004) target = $region48
      $region47: #{tpu_custom_call.1} parent=5 // pred_region
        %s2007 = ssub.s32 %s14, 2
        // Predicated region
        $region49: #{tpu_custom_call.1} parent=47 // pred_check
          %p2008 = pneg %p153
        $region50: #{tpu_custom_call.1} parent=47 // pred_check_branch
          %2010 = sbr.rel (%p2008) target = $region52
        $region51: #{tpu_custom_call.1} parent=47 // pred_region
          %s2011 = sand.u32 %s138, 1
          %s2012 = scalar_lea.sflag [#allocation3], %s2011
          %s2013 = sand.u32 %s138, 1
          %s2014 = smul.addr %s2013, 128
          %s2015 = scalar_lea.vmem [#allocation2], %s2014
          %2017 = dma.done %s2012, 2048
        $region52: #{tpu_custom_call.1} parent=47 // pred_fallthru
          _
      $region48: #{tpu_custom_call.1} parent=5 // pred_fallthru
        _
    $region6: #{tpu_custom_call.1} parent=1 // loop_footer
      %s18 = sadd.s32 1, %s14
    $region7: #{tpu_custom_call.1} parent=1 // loop_footer_branch
      %13 = sbr.rel target = $region3
    $region8: #{tpu_custom_call.1} parent=1 // loop_exit
      _
    %2018 = vsyncpa [#allocation3], 1
    %s2019 = scalar_lea.sflag [#allocation3], 1
    %2020 = vsyncpa %s2019, 1

</llo_original>
